<compile_context>
chip_gen: v5e
topology: v5e:2x2
jax: 0.10.0
libtpu: 0.0.40
codegen_flags: <defaults>
</compile_context>

<pallas_src>
import jax
import jax.numpy as jnp
from jax.experimental import pallas as pl
from jax.experimental.pallas import tpu as pltpu

H_IN, H1, H2, N_CLASSES = 768, 512, 256, 7
N_CLASSES_PAD = 128  # lane-dense padded class dim
NEG_INF = -1e30      # baked into padded fc3 bias columns


def _round_up(x, m):
    return (x + m - 1) // m * m


def bert_head_kernel(x_ref, w1_ref, b1_ref, w2_ref, b2_ref, w3_ref, b3_ref,
                     o_ref):
    x = x_ref[...]  # (TILE_B, 768) bf16

    # fc1 + ReLU  (bf16 MXU inputs, f32 accumulate)
    h1 = jnp.dot(x, w1_ref[...], preferred_element_type=jnp.float32) + b1_ref[...]
    h1 = jnp.maximum(h1, 0.0).astype(jnp.bfloat16)
    # dropout(p=0.2): identity at inference (eval mode)
    # TODO(synk): training-mode dropout would use pltpu.prng_seed/prng_random_bits.

    # fc2 + ReLU
    h2 = jnp.dot(h1, w2_ref[...], preferred_element_type=jnp.float32) + b2_ref[...]
    h2 = jnp.maximum(h2, 0.0).astype(jnp.bfloat16)

    # fc3. Padded weight columns are zero and padded bias columns are -1e30,
    # so padded logits are ~-1e30 and drop out of the softmax reduction with
    # no explicit mask (exp underflows to 0 in f32).
    logits = jnp.dot(h2, w3_ref[...], preferred_element_type=jnp.float32) + b3_ref[...]

    # LogSoftmax over dim=1 (padded lanes contribute nothing to max / sum).
    m = jnp.max(logits, axis=1, keepdims=True)
    z = logits - m
    sum_exp = jnp.sum(jnp.exp(z), axis=1, keepdims=True)

    # Lane-dense unmasked store of the full padded block (sliced outside).
    o_ref[...] = z - jnp.log(sum_exp)


def prepare_params(params):
    """One-time packing: bf16 weights, (1, n) biases, fc3 padded to 128 classes
    with -1e30 in the padded bias columns (kills the in-kernel mask)."""
    w1, b1, w2, b2, w3, b3 = params
    w3p = jnp.zeros((H2, N_CLASSES_PAD), jnp.bfloat16)
    w3p = w3p.at[:, :N_CLASSES].set(w3.astype(jnp.bfloat16))
    b3p = jnp.full((1, N_CLASSES_PAD), NEG_INF, jnp.float32)
    b3p = b3p.at[:, :N_CLASSES].set(b3.astype(jnp.float32))
    return (w1.astype(jnp.bfloat16), b1.reshape(1, H1).astype(jnp.float32),
            w2.astype(jnp.bfloat16), b2.reshape(1, H2).astype(jnp.float32),
            w3p, b3p)


def bert_arch_head(cls_hs, packed_params, *, tile_b=None):
    """cls_hs: (B, 768) -> (B, 7) log-probabilities."""
    w1, b1, w2, b2, w3p, b3p = packed_params
    B = cls_hs.shape[0]

    # Batch tile: MXU-height 128 for real serving batches, sublane-aligned
    # single tile for small B. (tile_b=256 can be passed on v6e/v7x to match
    # the 2x256^2 MXUs when B is large.)
    B8 = _round_up(max(B, 8), 8)
    if tile_b is None:
        tile_b = 128 if B8 >= 128 else B8
    Bp = _round_up(B8, tile_b)

    x = cls_hs.astype(jnp.bfloat16)
    if Bp != B:
        x = jnp.zeros((Bp, H_IN), jnp.bfloat16).at[:B].set(x)

    grid = (Bp // tile_b,)
    out = pl.pallas_call(
        bert_head_kernel,
        out_shape=jax.ShapeDtypeStruct((Bp, N_CLASSES_PAD), jnp.float32),
        grid=grid,
        in_specs=[
            pl.BlockSpec((tile_b, H_IN), lambda i: (i, 0)),        # x: tiled over batch
            pl.BlockSpec((H_IN, H1), lambda i: (0, 0)),            # weights stay VMEM-resident
            pl.BlockSpec((1, H1), lambda i: (0, 0)),
            pl.BlockSpec((H1, H2), lambda i: (0, 0)),
            pl.BlockSpec((1, H2), lambda i: (0, 0)),
            pl.BlockSpec((H2, N_CLASSES_PAD), lambda i: (0, 0)),
            pl.BlockSpec((1, N_CLASSES_PAD), lambda i: (0, 0)),
        ],
        out_specs=pl.BlockSpec((tile_b, N_CLASSES_PAD), lambda i: (i, 0)),
        compiler_params=pltpu.CompilerParams(
            dimension_semantics=("parallel",),   # shards batch tiles across TCs on v7x
            vmem_limit_bytes=16 << 20,           # right-sized; kernel needs < 4 MiB
        ),
        cost_estimate=pl.CostEstimate(
            flops=2 * Bp * (H_IN * H1 + H1 * H2 + H2 * N_CLASSES_PAD),
            transcendentals=Bp * N_CLASSES_PAD,
            bytes_accessed=(Bp * H_IN * 2
                            + (H_IN * H1 + H1 * H2 + H2 * N_CLASSES_PAD) * 2
                            + Bp * N_CLASSES_PAD * 4),
        ),
    )(x, w1, b1, w2, b2, w3p, b3p)

    return out[:B, :N_CLASSES]


def init_params(key):
    """Deterministic init mimicking nn.Linear (uniform +-1/sqrt(fan_in))."""
    ks = jax.random.split(key, 6)

    def lin(kw, kb, fan_in, fan_out):
        bound = 1.0 / jnp.sqrt(jnp.float32(fan_in))
        w = jax.random.uniform(kw, (fan_in, fan_out), jnp.float32, -bound, bound)
        b = jax.random.uniform(kb, (fan_out,), jnp.float32, -bound, bound)
        return w, b

    w1, b1 = lin(ks[0], ks[1], H_IN, H1)
    w2, b2 = lin(ks[2], ks[3], H1, H2)
    w3, b3 = lin(ks[4], ks[5], H2, N_CLASSES)
    return (w1, b1, w2, b2, w3, b3)


def synthetic_bert_cls(sent_id, mask, emb_table):
    """Deterministic stand-in for bert(sent_id, attention_mask=mask)[0][:, 0]."""
    tok = emb_table[sent_id]                       # (B, S, 768)
    m = mask[..., None].astype(jnp.float32)        # (B, S, 1)
    return (tok * m).sum(axis=1) / jnp.maximum(m.sum(axis=1), 1.0)  # (B, 768)


if __name__ == "__main__":
    key = jax.random.PRNGKey(0)
    k_par, k_emb, k_tok, k_msk = jax.random.split(key, 4)

    packed = prepare_params(init_params(k_par))    # pad/pack ONCE, outside hot path

    B, S, VOCAB = 8, 8, 64
    emb_table = jax.random.normal(k_emb, (VOCAB, H_IN), jnp.float32) * 0.02
    sent_id = jax.random.randint(k_tok, (B, S), 0, VOCAB, dtype=jnp.int32)
    mask = (jax.random.uniform(k_msk, (B, S)) > 0.2).astype(jnp.int32)
    mask = mask.at[:, 0].set(1)  # CLS position always attended

    cls_hs = synthetic_bert_cls(sent_id, mask, emb_table)      # plain-JAX glue
    log_probs = bert_arch_head(cls_hs, packed)                 # Pallas kernel
    log_probs = jax.block_until_ready(log_probs)

    # sanity: log_softmax rows should exp-sum to 1
    row_sums = jnp.exp(log_probs).sum(axis=1)
    assert log_probs.shape == (B, N_CLASSES)
    assert bool(jnp.allclose(row_sums, 1.0, atol=1e-3))

    print("KERNEL_OK")
</pallas_src>

<mosaic_0001>
module attributes {stable_mosaic.version = 11 : i64} {
  func.func @bert_head_kernel(%arg0: i32, %arg1: memref<8x768xbf16, #tpu.memory_space<vmem>>, %arg2: memref<768x512xbf16, #tpu.memory_space<vmem>>, %arg3: memref<1x512xf32, #tpu.memory_space<vmem>>, %arg4: memref<512x256xbf16, #tpu.memory_space<vmem>>, %arg5: memref<1x256xf32, #tpu.memory_space<vmem>>, %arg6: memref<256x128xbf16, #tpu.memory_space<vmem>>, %arg7: memref<1x128xf32, #tpu.memory_space<vmem>>, %arg8: memref<8x128xf32, #tpu.memory_space<vmem>>) attributes {dimension_semantics = [#tpu.dimension_semantics<parallel>], iteration_bounds = array<i64: 1>, scalar_prefetch = 0 : i64, scratch_operands = 0 : i64, tpu.core_type = #tpu.core_type<tc>, window_params = [{transform_indices = @transform_0, window_bounds = array<i64: 8, 768>}, {pipeline_mode = #tpu.pipeline_mode<synchronous>, transform_indices = @transform_1, window_bounds = array<i64: 768, 512>}, {pipeline_mode = #tpu.pipeline_mode<synchronous>, transform_indices = @transform_2, window_bounds = array<i64: 1, 512>}, {pipeline_mode = #tpu.pipeline_mode<synchronous>, transform_indices = @transform_3, window_bounds = array<i64: 512, 256>}, {pipeline_mode = #tpu.pipeline_mode<synchronous>, transform_indices = @transform_4, window_bounds = array<i64: 1, 256>}, {pipeline_mode = #tpu.pipeline_mode<synchronous>, transform_indices = @transform_5, window_bounds = array<i64: 256, 128>}, {pipeline_mode = #tpu.pipeline_mode<synchronous>, transform_indices = @transform_6, window_bounds = array<i64: 1, 128>}, {transform_indices = @transform_7, window_bounds = array<i64: 8, 128>}]} {
    %c0 = arith.constant 0 : index
    %c0_0 = arith.constant 0 : index
    %0 = vector.load %arg1[%c0, %c0_0] : memref<8x768xbf16, #tpu.memory_space<vmem>>, vector<8x768xbf16>
    %c0_1 = arith.constant 0 : index
    %c0_2 = arith.constant 0 : index
    %1 = vector.load %arg2[%c0_1, %c0_2] : memref<768x512xbf16, #tpu.memory_space<vmem>>, vector<768x512xbf16>
    %cst = arith.constant dense<0.000000e+00> : vector<8x512xf32>
    %2 = tpu.matmul %0, %1, %cst {dimension_numbers = #tpu.dot_dimension_numbers<[1], [0], [0], [1], [0, 0, 1, 1], [], []>} : vector<8x768xbf16>, vector<768x512xbf16>, vector<8x512xf32> -> vector<8x512xf32>
    %c0_3 = arith.constant 0 : index
    %c0_4 = arith.constant 0 : index
    %3 = vector.load %arg3[%c0_3, %c0_4] : memref<1x512xf32, #tpu.memory_space<vmem>>, vector<1x512xf32>
    %4 = vector.broadcast %3 : vector<1x512xf32> to vector<8x512xf32>
    %5 = arith.addf %2, %4 : vector<8x512xf32>
    %cst_5 = arith.constant 0.000000e+00 : f32
    %6 = vector.broadcast %cst_5 : f32 to vector<8x512xf32>
    %7 = arith.maximumf %5, %6 : vector<8x512xf32>
    %8 = arith.truncf %7 : vector<8x512xf32> to vector<8x512xbf16>
    %c0_6 = arith.constant 0 : index
    %c0_7 = arith.constant 0 : index
    %9 = vector.load %arg4[%c0_6, %c0_7] : memref<512x256xbf16, #tpu.memory_space<vmem>>, vector<512x256xbf16>
    %cst_8 = arith.constant dense<0.000000e+00> : vector<8x256xf32>
    %10 = tpu.matmul %8, %9, %cst_8 {dimension_numbers = #tpu.dot_dimension_numbers<[1], [0], [0], [1], [0, 0, 1, 1], [], []>} : vector<8x512xbf16>, vector<512x256xbf16>, vector<8x256xf32> -> vector<8x256xf32>
    %c0_9 = arith.constant 0 : index
    %c0_10 = arith.constant 0 : index
    %11 = vector.load %arg5[%c0_9, %c0_10] : memref<1x256xf32, #tpu.memory_space<vmem>>, vector<1x256xf32>
    %12 = vector.broadcast %11 : vector<1x256xf32> to vector<8x256xf32>
    %13 = arith.addf %10, %12 : vector<8x256xf32>
    %cst_11 = arith.constant 0.000000e+00 : f32
    %14 = vector.broadcast %cst_11 : f32 to vector<8x256xf32>
    %15 = arith.maximumf %13, %14 : vector<8x256xf32>
    %16 = arith.truncf %15 : vector<8x256xf32> to vector<8x256xbf16>
    %c0_12 = arith.constant 0 : index
    %c0_13 = arith.constant 0 : index
    %17 = vector.load %arg6[%c0_12, %c0_13] : memref<256x128xbf16, #tpu.memory_space<vmem>>, vector<256x128xbf16>
    %cst_14 = arith.constant dense<0.000000e+00> : vector<8x128xf32>
    %18 = tpu.matmul %16, %17, %cst_14 {dimension_numbers = #tpu.dot_dimension_numbers<[1], [0], [0], [1], [0, 0, 1, 1], [], []>} : vector<8x256xbf16>, vector<256x128xbf16>, vector<8x128xf32> -> vector<8x128xf32>
    %c0_15 = arith.constant 0 : index
    %c0_16 = arith.constant 0 : index
    %19 = vector.load %arg7[%c0_15, %c0_16] : memref<1x128xf32, #tpu.memory_space<vmem>>, vector<1x128xf32>
    %20 = vector.broadcast %19 : vector<1x128xf32> to vector<8x128xf32>
    %21 = arith.addf %18, %20 : vector<8x128xf32>
    %cst_17 = arith.constant dense<0xFF800000> : vector<8xf32>
    %22 = vector.multi_reduction <maximumf>, %21, %cst_17 [1] : vector<8x128xf32> to vector<8xf32>
    %23 = vector.shape_cast %22 : vector<8xf32> to vector<8x1xf32>
    %24 = vector.broadcast %23 : vector<8x1xf32> to vector<8x128xf32>
    %25 = arith.subf %21, %24 : vector<8x128xf32>
    %26 = math.exp %25 : vector<8x128xf32>
    %cst_18 = arith.constant dense<0.000000e+00> : vector<8xf32>
    %27 = vector.multi_reduction <add>, %26, %cst_18 [1] : vector<8x128xf32> to vector<8xf32>
    %28 = vector.shape_cast %27 : vector<8xf32> to vector<8x1xf32>
    %29 = math.log %28 : vector<8x1xf32>
    %30 = vector.broadcast %29 : vector<8x1xf32> to vector<8x128xf32>
    %31 = arith.subf %25, %30 : vector<8x128xf32>
    %c0_19 = arith.constant 0 : index
    %c0_20 = arith.constant 0 : index
    %32 = vector.load %arg8[%c0_19, %c0_20] : memref<8x128xf32, #tpu.memory_space<vmem>>, vector<8x128xf32>
    tpu.vector_store %arg8[%c0_19, %c0_20], %31 {strides = array<i32>} : memref<8x128xf32, #tpu.memory_space<vmem>>, vector<8x128xf32>,
    return
  }
  func.func @transform_0(%arg0: i32) -> (i32, i32) {
    %c0_i32 = arith.constant 0 : i32
    %c0_i32_0 = arith.constant 0 : i32
    return %arg0, %c0_i32 : i32, i32
  }
  func.func @transform_1(%arg0: i32) -> (i32, i32) {
    %c0_i32 = arith.constant 0 : i32
    %c0_i32_0 = arith.constant 0 : i32
    %c0_i32_1 = arith.constant 0 : i32
    return %c0_i32, %c0_i32_0 : i32, i32
  }
  func.func @transform_2(%arg0: i32) -> (i32, i32) {
    %c0_i32 = arith.constant 0 : i32
    %c0_i32_0 = arith.constant 0 : i32
    %c0_i32_1 = arith.constant 0 : i32
    return %c0_i32, %c0_i32_0 : i32, i32
  }
  func.func @transform_3(%arg0: i32) -> (i32, i32) {
    %c0_i32 = arith.constant 0 : i32
    %c0_i32_0 = arith.constant 0 : i32
    %c0_i32_1 = arith.constant 0 : i32
    return %c0_i32, %c0_i32_0 : i32, i32
  }
  func.func @transform_4(%arg0: i32) -> (i32, i32) {
    %c0_i32 = arith.constant 0 : i32
    %c0_i32_0 = arith.constant 0 : i32
    %c0_i32_1 = arith.constant 0 : i32
    return %c0_i32, %c0_i32_0 : i32, i32
  }
  func.func @transform_5(%arg0: i32) -> (i32, i32) {
    %c0_i32 = arith.constant 0 : i32
    %c0_i32_0 = arith.constant 0 : i32
    %c0_i32_1 = arith.constant 0 : i32
    return %c0_i32, %c0_i32_0 : i32, i32
  }
  func.func @transform_6(%arg0: i32) -> (i32, i32) {
    %c0_i32 = arith.constant 0 : i32
    %c0_i32_0 = arith.constant 0 : i32
    %c0_i32_1 = arith.constant 0 : i32
    return %c0_i32, %c0_i32_0 : i32, i32
  }
  func.func @transform_7(%arg0: i32) -> (i32, i32) {
    %c0_i32 = arith.constant 0 : i32
    %c0_i32_0 = arith.constant 0 : i32
    return %arg0, %c0_i32 : i32, i32
  }
}

</mosaic_0001>

<llo_original>
// kernel: tpu_custom_call.1
$region0: #{tpu_custom_call.1}
  #allocation0 [shape = 'u32[]', space=smem, size = 0x4, offset = 0x4, fixed_abs, tag = 'smem constant byte address 0x4 - core index']
  #allocation1 [shape = 'u32[72,128]{1,0:T(1,128)}', space=vmem, size = 0x9000, scoped, tag = 'internal scratch']
  %s0 = inlined_call_operand.hbm [shape: bf16[8,768], index: 0, kind: input, shape index: {}]
  %s1 = inlined_call_operand.hbm [shape: bf16[768,512], index: 1, kind: input, shape index: {}]
  %s2 = inlined_call_operand.hbm [shape: f32[1,512], index: 2, kind: input, shape index: {}]
  %s3 = inlined_call_operand.hbm [shape: bf16[512,256], index: 3, kind: input, shape index: {}]
  %s4 = inlined_call_operand.vmem [shape: f32[1,256], index: 4, kind: input, shape index: {}]
  %s5 = inlined_call_operand.hbm [shape: bf16[256,128], index: 5, kind: input, shape index: {}]
  %s6 = inlined_call_operand.vmem [shape: f32[1,128], index: 6, kind: input, shape index: {}]
  %s7 = inlined_call_operand.hbm [shape: f32[8,128], index: 7, kind: output, shape index: {}]
  %s8 = sld [smem:[#allocation0]]
  $region58: #{tpu_custom_call.1} parent=0
    _
  %s10 = ssub.s32 1, %s8
  %s11 = scalar_select 0, %s10, %s8
  $region1: #{tpu_custom_call.1} parent=0
    #allocation2 [shape = 'u8[12288]{0}', space=vmem, size = 0x3000, scoped, tag = 'input window, operand 0, single buffered']
    #allocation3 [shape = 's32[1]{0}', space=sflag, size = 0x4, scoped, tag = 'scoped memory for tpu_custom_call.1']
    #allocation4 [shape = 's32[1]{0}', space=sflag, size = 0x4, scoped, tag = 'scoped memory for tpu_custom_call.1']
    #allocation5 [shape = 'u8[786432]{0}', space=vmem, size = 0xc0000, scoped, tag = 'input window, operand 1, single buffered']
    #allocation6 [shape = 's32[1]{0}', space=sflag, size = 0x4, scoped, tag = 'scoped memory for tpu_custom_call.1']
    #allocation7 [shape = 'u8[2048]{0}', space=vmem, size = 0x800, scoped, tag = 'input window, operand 2, single buffered']
    #allocation8 [shape = 'u8[262144]{0}', space=vmem, size = 0x40000, scoped, tag = 'input window, operand 3, single buffered']
    #allocation9 [shape = 's32[1]{0}', space=sflag, size = 0x4, scoped, tag = 'scoped memory for tpu_custom_call.1']
    #allocation10 [shape = 'u8[65536]{0}', space=vmem, size = 0x10000, scoped, tag = 'input window, operand 5, single buffered']
    #allocation11 [shape = 'u8[4096]{0}', space=vmem, size = 0x1000, scoped, tag = 'output window, operand 0, single buffered']
    %12 = vsyncpa [#allocation3], 0
    %13 = vsyncpa [#allocation6], 0
    %14 = vsyncpa [#allocation9], 0
    %15 = vsyncpa [#allocation4], 0
    // Predicated region
    $region2: #{tpu_custom_call.1} parent=1 // pred_check
      _
    $region3: #{tpu_custom_call.1} parent=1 // pred_check_branch
      %17 = sbr.rel (0) target = $region5
    $region4: #{tpu_custom_call.1} parent=1 // pred_region
      %19 = vsyncadd [#allocation3], 0
      %s21 = sshll.u32 %s0, 4
      %s22 = int_to_ptr.hbm [resolvable:$true] %s21
      %s23 = sshll.u32 [#allocation2], 4
      %s24 = int_to_ptr.vmem [resolvable:$true] %s23
      %26 = dma.hbm_to_vmem [thread:$0]  %s22, 384, %s24, [#allocation3]
    $region5: #{tpu_custom_call.1} parent=1 // pred_fallthru
      _
    // Predicated region
    $region6: #{tpu_custom_call.1} parent=1 // pred_check
      _
    $region7: #{tpu_custom_call.1} parent=1 // pred_check_branch
      %28 = sbr.rel (0) target = $region9
    $region8: #{tpu_custom_call.1} parent=1 // pred_region
      %30 = vsyncadd [#allocation6], 0
      %s31 = sshll.u32 %s1, 4
      %s32 = int_to_ptr.hbm [resolvable:$true] %s31
      %s33 = sshll.u32 [#allocation5], 4
      %s34 = int_to_ptr.vmem [resolvable:$true] %s33
      %39 = dma.hbm_to_vmem [thread:$0]  %s32, 24576, %s34, [#allocation6], 256, 256, 16
    $region9: #{tpu_custom_call.1} parent=1 // pred_fallthru
      _
    // Predicated region
    $region10: #{tpu_custom_call.1} parent=1 // pred_check
      _
    $region11: #{tpu_custom_call.1} parent=1 // pred_check_branch
      %41 = sbr.rel (0) target = $region13
    $region12: #{tpu_custom_call.1} parent=1 // pred_region
      %43 = vsyncadd [#allocation6], 0
      %s45 = sshll.u32 %s2, 4
      %s46 = int_to_ptr.hbm [resolvable:$true] %s45
      %s47 = sshll.u32 [#allocation7], 4
      %s48 = int_to_ptr.vmem [resolvable:$true] %s47
      %50 = dma.hbm_to_vmem [thread:$0]  %s46, 64, %s48, [#allocation6]
    $region13: #{tpu_custom_call.1} parent=1 // pred_fallthru
      _
    // Predicated region
    $region14: #{tpu_custom_call.1} parent=1 // pred_check
      _
    $region15: #{tpu_custom_call.1} parent=1 // pred_check_branch
      %52 = sbr.rel (0) target = $region17
    $region16: #{tpu_custom_call.1} parent=1 // pred_region
      %54 = vsyncadd [#allocation9], 0
      %s55 = sshll.u32 %s3, 4
      %s56 = int_to_ptr.hbm [resolvable:$true] %s55
      %s57 = sshll.u32 [#allocation8], 4
      %s58 = int_to_ptr.vmem [resolvable:$true] %s57
      %63 = dma.hbm_to_vmem [thread:$0]  %s56, 8192, %s58, [#allocation9], 128, 128, 8
    $region17: #{tpu_custom_call.1} parent=1 // pred_fallthru
      _
    // Predicated region
    $region18: #{tpu_custom_call.1} parent=1 // pred_check
      _
    $region19: #{tpu_custom_call.1} parent=1 // pred_check_branch
      %65 = sbr.rel (0) target = $region21
    $region20: #{tpu_custom_call.1} parent=1 // pred_region
      _
    $region21: #{tpu_custom_call.1} parent=1 // pred_fallthru
      _
    // Predicated region
    $region22: #{tpu_custom_call.1} parent=1 // pred_check
      _
    $region23: #{tpu_custom_call.1} parent=1 // pred_check_branch
      %67 = sbr.rel (0) target = $region25
    $region24: #{tpu_custom_call.1} parent=1 // pred_region
      %69 = vsyncadd [#allocation9], 0
      %s70 = sshll.u32 %s5, 4
      %s71 = int_to_ptr.hbm [resolvable:$true] %s70
      %s72 = sshll.u32 [#allocation10], 4
      %s73 = int_to_ptr.vmem [resolvable:$true] %s72
      %78 = dma.hbm_to_vmem [thread:$0]  %s71, 2048, %s73, [#allocation9], 64, 64, 4
    $region25: #{tpu_custom_call.1} parent=1 // pred_fallthru
      _
    // Predicated region
    $region26: #{tpu_custom_call.1} parent=1 // pred_check
      _
    $region27: #{tpu_custom_call.1} parent=1 // pred_check_branch
      %80 = sbr.rel (0) target = $region29
    $region28: #{tpu_custom_call.1} parent=1 // pred_region
      _
    $region29: #{tpu_custom_call.1} parent=1 // pred_fallthru
      _
    // Predicated region
    $region30: #{tpu_custom_call.1} parent=1 // pred_check
      _
    $region31: #{tpu_custom_call.1} parent=1 // pred_check_branch
      %82 = sbr.rel (0) target = $region33
    $region32: #{tpu_custom_call.1} parent=1 // pred_region
      %84 = dma.done [#allocation3], 384
    $region33: #{tpu_custom_call.1} parent=1 // pred_fallthru
      _
    // Predicated region
    $region34: #{tpu_custom_call.1} parent=1 // pred_check
      _
    $region35: #{tpu_custom_call.1} parent=1 // pred_check_branch
      %86 = sbr.rel (0) target = $region37
    $region36: #{tpu_custom_call.1} parent=1 // pred_region
      %88 = dma.done [#allocation6], 24576
    $region37: #{tpu_custom_call.1} parent=1 // pred_fallthru
      _
    // Predicated region
    $region38: #{tpu_custom_call.1} parent=1 // pred_check
      _
    $region39: #{tpu_custom_call.1} parent=1 // pred_check_branch
      %90 = sbr.rel (0) target = $region41
    $region40: #{tpu_custom_call.1} parent=1 // pred_region
      %92 = dma.done [#allocation6], 64
    $region41: #{tpu_custom_call.1} parent=1 // pred_fallthru
      _
    // Predicated region
    $region42: #{tpu_custom_call.1} parent=1 // pred_check
      _
    $region43: #{tpu_custom_call.1} parent=1 // pred_check_branch
      %94 = sbr.rel (0) target = $region45
    $region44: #{tpu_custom_call.1} parent=1 // pred_region
      %96 = dma.done [#allocation9], 8192
    $region45: #{tpu_custom_call.1} parent=1 // pred_fallthru
      _
    // Predicated region
    $region46: #{tpu_custom_call.1} parent=1 // pred_check
      _
    $region47: #{tpu_custom_call.1} parent=1 // pred_check_branch
      %98 = sbr.rel (0) target = $region49
    $region48: #{tpu_custom_call.1} parent=1 // pred_region
      %100 = dma.done [#allocation9], 2048
    $region49: #{tpu_custom_call.1} parent=1 // pred_fallthru
      _
    %v101 = vld [vmem:[#allocation2] sm:$0xff]
    %v102 = vld [vmem:[#allocation2 + $0x8] sm:$0xff]
    %v103 = vld [vmem:[#allocation2 + $0x10] sm:$0xff]
    %v104 = vld [vmem:[#allocation5] sm:$0xff]
    %v105 = vld [vmem:[#allocation5 + $0x8] sm:$0xff]
    %v106 = vld [vmem:[#allocation5 + $0x10] sm:$0xff]
    %v107 = vld [vmem:[#allocation5 + $0x18] sm:$0xff]
    %v108 = vld [vmem:[#allocation5 + $0x20] sm:$0xff]
    %v109 = vld [vmem:[#allocation5 + $0x28] sm:$0xff]
    %v110 = vld [vmem:[#allocation5 + $0x30] sm:$0xff]
    %v111 = vld [vmem:[#allocation5 + $0x38] sm:$0xff]
    %v112 = vld [vmem:[#allocation5 + $0x40] sm:$0xff]
    %v113 = vld [vmem:[#allocation5 + $0x48] sm:$0xff]
    %v114 = vld [vmem:[#allocation5 + $0x50] sm:$0xff]
    %v115 = vld [vmem:[#allocation5 + $0x58] sm:$0xff]
    %v116 = vld [vmem:[#allocation5 + $0x60] sm:$0xff]
    %v117 = vld [vmem:[#allocation5 + $0x68] sm:$0xff]
    %v118 = vld [vmem:[#allocation5 + $0x70] sm:$0xff]
    %v119 = vld [vmem:[#allocation5 + $0x78] sm:$0xff]
    %v120 = vld [vmem:[#allocation5 + $0x80] sm:$0xff]
    %v121 = vld [vmem:[#allocation5 + $0x88] sm:$0xff]
    %v122 = vld [vmem:[#allocation5 + $0x90] sm:$0xff]
    %v123 = vld [vmem:[#allocation5 + $0x98] sm:$0xff]
    %v124 = vld [vmem:[#allocation5 + $0xa0] sm:$0xff]
    %v125 = vld [vmem:[#allocation5 + $0xa8] sm:$0xff]
    %v126 = vld [vmem:[#allocation5 + $0xb0] sm:$0xff]
    %v127 = vld [vmem:[#allocation5 + $0xb8] sm:$0xff]
    %v128 = vld [vmem:[#allocation5 + $0xc0] sm:$0xff]
    %v129 = vld [vmem:[#allocation5 + $0xc8] sm:$0xff]
    %v130 = vld [vmem:[#allocation5 + $0xd0] sm:$0xff]
    %v131 = vld [vmem:[#allocation5 + $0xd8] sm:$0xff]
    %v132 = vld [vmem:[#allocation5 + $0xe0] sm:$0xff]
    %v133 = vld [vmem:[#allocation5 + $0xe8] sm:$0xff]
    %v134 = vld [vmem:[#allocation5 + $0xf0] sm:$0xff]
    %v135 = vld [vmem:[#allocation5 + $0xf8] sm:$0xff]
    %v136 = vld [vmem:[#allocation5 + $0x100] sm:$0xff]
    %v137 = vld [vmem:[#allocation5 + $0x108] sm:$0xff]
    %v138 = vld [vmem:[#allocation5 + $0x110] sm:$0xff]
    %v139 = vld [vmem:[#allocation5 + $0x118] sm:$0xff]
    %v140 = vld [vmem:[#allocation5 + $0x120] sm:$0xff]
    %v141 = vld [vmem:[#allocation5 + $0x128] sm:$0xff]
    %v142 = vld [vmem:[#allocation5 + $0x130] sm:$0xff]
    %v143 = vld [vmem:[#allocation5 + $0x138] sm:$0xff]
    %v144 = vld [vmem:[#allocation5 + $0x140] sm:$0xff]
    %v145 = vld [vmem:[#allocation5 + $0x148] sm:$0xff]
    %v146 = vld [vmem:[#allocation5 + $0x150] sm:$0xff]
    %v147 = vld [vmem:[#allocation5 + $0x158] sm:$0xff]
    %v148 = vld [vmem:[#allocation5 + $0x160] sm:$0xff]
    %v149 = vld [vmem:[#allocation5 + $0x168] sm:$0xff]
    %v150 = vld [vmem:[#allocation5 + $0x170] sm:$0xff]
    %v151 = vld [vmem:[#allocation5 + $0x178] sm:$0xff]
    %v152 = vld [vmem:[#allocation5 + $0x180] sm:$0xff]
    %v153 = vld [vmem:[#allocation5 + $0x188] sm:$0xff]
    %v154 = vld [vmem:[#allocation5 + $0x190] sm:$0xff]
    %v155 = vld [vmem:[#allocation5 + $0x198] sm:$0xff]
    %v156 = vld [vmem:[#allocation5 + $0x1a0] sm:$0xff]
    %v157 = vld [vmem:[#allocation5 + $0x1a8] sm:$0xff]
    %v158 = vld [vmem:[#allocation5 + $0x1b0] sm:$0xff]
    %v159 = vld [vmem:[#allocation5 + $0x1b8] sm:$0xff]
    %v160 = vld [vmem:[#allocation5 + $0x1c0] sm:$0xff]
    %v161 = vld [vmem:[#allocation5 + $0x1c8] sm:$0xff]
    %v162 = vld [vmem:[#allocation5 + $0x1d0] sm:$0xff]
    %v163 = vld [vmem:[#allocation5 + $0x1d8] sm:$0xff]
    %v164 = vld [vmem:[#allocation5 + $0x1e0] sm:$0xff]
    %v165 = vld [vmem:[#allocation5 + $0x1e8] sm:$0xff]
    %v166 = vld [vmem:[#allocation5 + $0x1f0] sm:$0xff]
    %v167 = vld [vmem:[#allocation5 + $0x1f8] sm:$0xff]
    %v168 = vld [vmem:[#allocation5 + $0x200] sm:$0xff]
    %v169 = vld [vmem:[#allocation5 + $0x208] sm:$0xff]
    %v170 = vld [vmem:[#allocation5 + $0x210] sm:$0xff]
    %v171 = vld [vmem:[#allocation5 + $0x218] sm:$0xff]
    %v172 = vld [vmem:[#allocation5 + $0x220] sm:$0xff]
    %v173 = vld [vmem:[#allocation5 + $0x228] sm:$0xff]
    %v174 = vld [vmem:[#allocation5 + $0x230] sm:$0xff]
    %v175 = vld [vmem:[#allocation5 + $0x238] sm:$0xff]
    %v176 = vld [vmem:[#allocation5 + $0x240] sm:$0xff]
    %v177 = vld [vmem:[#allocation5 + $0x248] sm:$0xff]
    %v178 = vld [vmem:[#allocation5 + $0x250] sm:$0xff]
    %v179 = vld [vmem:[#allocation5 + $0x258] sm:$0xff]
    %v180 = vld [vmem:[#allocation5 + $0x260] sm:$0xff]
    %v181 = vld [vmem:[#allocation5 + $0x268] sm:$0xff]
    %v182 = vld [vmem:[#allocation5 + $0x270] sm:$0xff]
    %v183 = vld [vmem:[#allocation5 + $0x278] sm:$0xff]
    %v184 = vld [vmem:[#allocation5 + $0x280] sm:$0xff]
    %v185 = vld [vmem:[#allocation5 + $0x288] sm:$0xff]
    %v186 = vld [vmem:[#allocation5 + $0x290] sm:$0xff]
    %v187 = vld [vmem:[#allocation5 + $0x298] sm:$0xff]
    %v188 = vld [vmem:[#allocation5 + $0x2a0] sm:$0xff]
    %v189 = vld [vmem:[#allocation5 + $0x2a8] sm:$0xff]
    %v190 = vld [vmem:[#allocation5 + $0x2b0] sm:$0xff]
    %v191 = vld [vmem:[#allocation5 + $0x2b8] sm:$0xff]
    %v192 = vld [vmem:[#allocation5 + $0x2c0] sm:$0xff]
    %v193 = vld [vmem:[#allocation5 + $0x2c8] sm:$0xff]
    %v194 = vld [vmem:[#allocation5 + $0x2d0] sm:$0xff]
    %v195 = vld [vmem:[#allocation5 + $0x2d8] sm:$0xff]
    %v196 = vld [vmem:[#allocation5 + $0x2e0] sm:$0xff]
    %v197 = vld [vmem:[#allocation5 + $0x2e8] sm:$0xff]
    %v198 = vld [vmem:[#allocation5 + $0x2f0] sm:$0xff]
    %v199 = vld [vmem:[#allocation5 + $0x2f8] sm:$0xff]
    %v200 = vld [vmem:[#allocation5 + $0x300] sm:$0xff]
    %v201 = vld [vmem:[#allocation5 + $0x308] sm:$0xff]
    %v202 = vld [vmem:[#allocation5 + $0x310] sm:$0xff]
    %v203 = vld [vmem:[#allocation5 + $0x318] sm:$0xff]
    %v204 = vld [vmem:[#allocation5 + $0x320] sm:$0xff]
    %v205 = vld [vmem:[#allocation5 + $0x328] sm:$0xff]
    %v206 = vld [vmem:[#allocation5 + $0x330] sm:$0xff]
    %v207 = vld [vmem:[#allocation5 + $0x338] sm:$0xff]
    %v208 = vld [vmem:[#allocation5 + $0x340] sm:$0xff]
    %v209 = vld [vmem:[#allocation5 + $0x348] sm:$0xff]
    %v210 = vld [vmem:[#allocation5 + $0x350] sm:$0xff]
    %v211 = vld [vmem:[#allocation5 + $0x358] sm:$0xff]
    %v212 = vld [vmem:[#allocation5 + $0x360] sm:$0xff]
    %v213 = vld [vmem:[#allocation5 + $0x368] sm:$0xff]
    %v214 = vld [vmem:[#allocation5 + $0x370] sm:$0xff]
    %v215 = vld [vmem:[#allocation5 + $0x378] sm:$0xff]
    %v216 = vld [vmem:[#allocation5 + $0x380] sm:$0xff]
    %v217 = vld [vmem:[#allocation5 + $0x388] sm:$0xff]
    %v218 = vld [vmem:[#allocation5 + $0x390] sm:$0xff]
    %v219 = vld [vmem:[#allocation5 + $0x398] sm:$0xff]
    %v220 = vld [vmem:[#allocation5 + $0x3a0] sm:$0xff]
    %v221 = vld [vmem:[#allocation5 + $0x3a8] sm:$0xff]
    %v222 = vld [vmem:[#allocation5 + $0x3b0] sm:$0xff]
    %v223 = vld [vmem:[#allocation5 + $0x3b8] sm:$0xff]
    %v224 = vld [vmem:[#allocation5 + $0x3c0] sm:$0xff]
    %v225 = vld [vmem:[#allocation5 + $0x3c8] sm:$0xff]
    %v226 = vld [vmem:[#allocation5 + $0x3d0] sm:$0xff]
    %v227 = vld [vmem:[#allocation5 + $0x3d8] sm:$0xff]
    %v228 = vld [vmem:[#allocation5 + $0x3e0] sm:$0xff]
    %v229 = vld [vmem:[#allocation5 + $0x3e8] sm:$0xff]
    %v230 = vld [vmem:[#allocation5 + $0x3f0] sm:$0xff]
    %v231 = vld [vmem:[#allocation5 + $0x3f8] sm:$0xff]
    %v232 = vld [vmem:[#allocation5 + $0x400] sm:$0xff]
    %v233 = vld [vmem:[#allocation5 + $0x408] sm:$0xff]
    %v234 = vld [vmem:[#allocation5 + $0x410] sm:$0xff]
    %v235 = vld [vmem:[#allocation5 + $0x418] sm:$0xff]
    %v236 = vld [vmem:[#allocation5 + $0x420] sm:$0xff]
    %v237 = vld [vmem:[#allocation5 + $0x428] sm:$0xff]
    %v238 = vld [vmem:[#allocation5 + $0x430] sm:$0xff]
    %v239 = vld [vmem:[#allocation5 + $0x438] sm:$0xff]
    %v240 = vld [vmem:[#allocation5 + $0x440] sm:$0xff]
    %v241 = vld [vmem:[#allocation5 + $0x448] sm:$0xff]
    %v242 = vld [vmem:[#allocation5 + $0x450] sm:$0xff]
    %v243 = vld [vmem:[#allocation5 + $0x458] sm:$0xff]
    %v244 = vld [vmem:[#allocation5 + $0x460] sm:$0xff]
    %v245 = vld [vmem:[#allocation5 + $0x468] sm:$0xff]
    %v246 = vld [vmem:[#allocation5 + $0x470] sm:$0xff]
    %v247 = vld [vmem:[#allocation5 + $0x478] sm:$0xff]
    %v248 = vld [vmem:[#allocation5 + $0x480] sm:$0xff]
    %v249 = vld [vmem:[#allocation5 + $0x488] sm:$0xff]
    %v250 = vld [vmem:[#allocation5 + $0x490] sm:$0xff]
    %v251 = vld [vmem:[#allocation5 + $0x498] sm:$0xff]
    %v252 = vld [vmem:[#allocation5 + $0x4a0] sm:$0xff]
    %v253 = vld [vmem:[#allocation5 + $0x4a8] sm:$0xff]
    %v254 = vld [vmem:[#allocation5 + $0x4b0] sm:$0xff]
    %v255 = vld [vmem:[#allocation5 + $0x4b8] sm:$0xff]
    %v256 = vld [vmem:[#allocation5 + $0x4c0] sm:$0xff]
    %v257 = vld [vmem:[#allocation5 + $0x4c8] sm:$0xff]
    %v258 = vld [vmem:[#allocation5 + $0x4d0] sm:$0xff]
    %v259 = vld [vmem:[#allocation5 + $0x4d8] sm:$0xff]
    %v260 = vld [vmem:[#allocation5 + $0x4e0] sm:$0xff]
    %v261 = vld [vmem:[#allocation5 + $0x4e8] sm:$0xff]
    %v262 = vld [vmem:[#allocation5 + $0x4f0] sm:$0xff]
    %v263 = vld [vmem:[#allocation5 + $0x4f8] sm:$0xff]
    %v264 = vld [vmem:[#allocation5 + $0x500] sm:$0xff]
    %v265 = vld [vmem:[#allocation5 + $0x508] sm:$0xff]
    %v266 = vld [vmem:[#allocation5 + $0x510] sm:$0xff]
    %v267 = vld [vmem:[#allocation5 + $0x518] sm:$0xff]
    %v268 = vld [vmem:[#allocation5 + $0x520] sm:$0xff]
    %v269 = vld [vmem:[#allocation5 + $0x528] sm:$0xff]
    %v270 = vld [vmem:[#allocation5 + $0x530] sm:$0xff]
    %v271 = vld [vmem:[#allocation5 + $0x538] sm:$0xff]
    %v272 = vld [vmem:[#allocation5 + $0x540] sm:$0xff]
    %v273 = vld [vmem:[#allocation5 + $0x548] sm:$0xff]
    %v274 = vld [vmem:[#allocation5 + $0x550] sm:$0xff]
    %v275 = vld [vmem:[#allocation5 + $0x558] sm:$0xff]
    %v276 = vld [vmem:[#allocation5 + $0x560] sm:$0xff]
    %v277 = vld [vmem:[#allocation5 + $0x568] sm:$0xff]
    %v278 = vld [vmem:[#allocation5 + $0x570] sm:$0xff]
    %v279 = vld [vmem:[#allocation5 + $0x578] sm:$0xff]
    %v280 = vld [vmem:[#allocation5 + $0x580] sm:$0xff]
    %v281 = vld [vmem:[#allocation5 + $0x588] sm:$0xff]
    %v282 = vld [vmem:[#allocation5 + $0x590] sm:$0xff]
    %v283 = vld [vmem:[#allocation5 + $0x598] sm:$0xff]
    %v284 = vld [vmem:[#allocation5 + $0x5a0] sm:$0xff]
    %v285 = vld [vmem:[#allocation5 + $0x5a8] sm:$0xff]
    %v286 = vld [vmem:[#allocation5 + $0x5b0] sm:$0xff]
    %v287 = vld [vmem:[#allocation5 + $0x5b8] sm:$0xff]
    %v288 = vld [vmem:[#allocation5 + $0x5c0] sm:$0xff]
    %v289 = vld [vmem:[#allocation5 + $0x5c8] sm:$0xff]
    %v290 = vld [vmem:[#allocation5 + $0x5d0] sm:$0xff]
    %v291 = vld [vmem:[#allocation5 + $0x5d8] sm:$0xff]
    %v292 = vld [vmem:[#allocation5 + $0x5e0] sm:$0xff]
    %v293 = vld [vmem:[#allocation5 + $0x5e8] sm:$0xff]
    %v294 = vld [vmem:[#allocation5 + $0x5f0] sm:$0xff]
    %v295 = vld [vmem:[#allocation5 + $0x5f8] sm:$0xff]
    %v296 = vld [vmem:[#allocation7] sm:$0xf]
    %v298 = vperm.slane %v296, 0
    %v299 = vperm.slane %v296, 1
    %v300 = vperm.slane %v296, 2
    %v301 = vperm.slane %v296, 3
    %v309 = vunpack.c.l.b16 %v101
    %v310 = vunpack.c.h.b16 %v101
    %v311 = vunpack.c.l.b16 %v102
    %v312 = vunpack.c.h.b16 %v102
    %v313 = vunpack.c.l.b16 %v103
    %v314 = vunpack.c.h.b16 %v103
    %v315 = vpack.c.b16 %v309, %v309
    %v316 = vpack.c.b16 %v310, %v310
    %v317 = vpack.c.b16 %v311, %v311
    %v318 = vpack.c.b16 %v312, %v312
    %v319 = vpack.c.b16 %v313, %v313
    %v320 = vpack.c.b16 %v314, %v314
    %v519 = vunpack.c.l.b16 %v104
    %v520 = vunpack.c.h.b16 %v104
    %v521 = vunpack.c.l.b16 %v105
    %v522 = vunpack.c.h.b16 %v105
    %v523 = vunpack.c.l.b16 %v106
    %v524 = vunpack.c.h.b16 %v106
    %v525 = vunpack.c.l.b16 %v107
    %v526 = vunpack.c.h.b16 %v107
    %v527 = vunpack.c.l.b16 %v108
    %v528 = vunpack.c.h.b16 %v108
    %v529 = vunpack.c.l.b16 %v109
    %v530 = vunpack.c.h.b16 %v109
    %v531 = vunpack.c.l.b16 %v110
    %v532 = vunpack.c.h.b16 %v110
    %v533 = vunpack.c.l.b16 %v111
    %v534 = vunpack.c.h.b16 %v111
    %v535 = vunpack.c.l.b16 %v112
    %v536 = vunpack.c.h.b16 %v112
    %v537 = vunpack.c.l.b16 %v113
    %v538 = vunpack.c.h.b16 %v113
    %v539 = vunpack.c.l.b16 %v114
    %v540 = vunpack.c.h.b16 %v114
    %v541 = vunpack.c.l.b16 %v115
    %v542 = vunpack.c.h.b16 %v115
    %v543 = vunpack.c.l.b16 %v116
    %v544 = vunpack.c.h.b16 %v116
    %v545 = vunpack.c.l.b16 %v117
    %v546 = vunpack.c.h.b16 %v117
    %v547 = vunpack.c.l.b16 %v118
    %v548 = vunpack.c.h.b16 %v118
    %v549 = vunpack.c.l.b16 %v119
    %v550 = vunpack.c.h.b16 %v119
    %v551 = vunpack.c.l.b16 %v120
    %v552 = vunpack.c.h.b16 %v120
    %v553 = vunpack.c.l.b16 %v121
    %v554 = vunpack.c.h.b16 %v121
    %v555 = vunpack.c.l.b16 %v122
    %v556 = vunpack.c.h.b16 %v122
    %v557 = vunpack.c.l.b16 %v123
    %v558 = vunpack.c.h.b16 %v123
    %v559 = vunpack.c.l.b16 %v124
    %v560 = vunpack.c.h.b16 %v124
    %v561 = vunpack.c.l.b16 %v125
    %v562 = vunpack.c.h.b16 %v125
    %v563 = vunpack.c.l.b16 %v126
    %v564 = vunpack.c.h.b16 %v126
    %v565 = vunpack.c.l.b16 %v127
    %v566 = vunpack.c.h.b16 %v127
    %v567 = vunpack.c.l.b16 %v128
    %v568 = vunpack.c.h.b16 %v128
    %v569 = vunpack.c.l.b16 %v129
    %v570 = vunpack.c.h.b16 %v129
    %v571 = vunpack.c.l.b16 %v130
    %v572 = vunpack.c.h.b16 %v130
    %v573 = vunpack.c.l.b16 %v131
    %v574 = vunpack.c.h.b16 %v131
    %v575 = vunpack.c.l.b16 %v132
    %v576 = vunpack.c.h.b16 %v132
    %v577 = vunpack.c.l.b16 %v133
    %v578 = vunpack.c.h.b16 %v133
    %v579 = vunpack.c.l.b16 %v134
    %v580 = vunpack.c.h.b16 %v134
    %v581 = vunpack.c.l.b16 %v135
    %v582 = vunpack.c.h.b16 %v135
    %v583 = vunpack.c.l.b16 %v136
    %v584 = vunpack.c.h.b16 %v136
    %v585 = vunpack.c.l.b16 %v137
    %v586 = vunpack.c.h.b16 %v137
    %v587 = vunpack.c.l.b16 %v138
    %v588 = vunpack.c.h.b16 %v138
    %v589 = vunpack.c.l.b16 %v139
    %v590 = vunpack.c.h.b16 %v139
    %v591 = vunpack.c.l.b16 %v140
    %v592 = vunpack.c.h.b16 %v140
    %v593 = vunpack.c.l.b16 %v141
    %v594 = vunpack.c.h.b16 %v141
    %v595 = vunpack.c.l.b16 %v142
    %v596 = vunpack.c.h.b16 %v142
    %v597 = vunpack.c.l.b16 %v143
    %v598 = vunpack.c.h.b16 %v143
    %v599 = vunpack.c.l.b16 %v144
    %v600 = vunpack.c.h.b16 %v144
    %v601 = vunpack.c.l.b16 %v145
    %v602 = vunpack.c.h.b16 %v145
    %v603 = vunpack.c.l.b16 %v146
    %v604 = vunpack.c.h.b16 %v146
    %v605 = vunpack.c.l.b16 %v147
    %v606 = vunpack.c.h.b16 %v147
    %v607 = vunpack.c.l.b16 %v148
    %v608 = vunpack.c.h.b16 %v148
    %v609 = vunpack.c.l.b16 %v149
    %v610 = vunpack.c.h.b16 %v149
    %v611 = vunpack.c.l.b16 %v150
    %v612 = vunpack.c.h.b16 %v150
    %v613 = vunpack.c.l.b16 %v151
    %v614 = vunpack.c.h.b16 %v151
    %v615 = vunpack.c.l.b16 %v152
    %v616 = vunpack.c.h.b16 %v152
    %v617 = vunpack.c.l.b16 %v153
    %v618 = vunpack.c.h.b16 %v153
    %v619 = vunpack.c.l.b16 %v154
    %v620 = vunpack.c.h.b16 %v154
    %v621 = vunpack.c.l.b16 %v155
    %v622 = vunpack.c.h.b16 %v155
    %v623 = vunpack.c.l.b16 %v156
    %v624 = vunpack.c.h.b16 %v156
    %v625 = vunpack.c.l.b16 %v157
    %v626 = vunpack.c.h.b16 %v157
    %v627 = vunpack.c.l.b16 %v158
    %v628 = vunpack.c.h.b16 %v158
    %v629 = vunpack.c.l.b16 %v159
    %v630 = vunpack.c.h.b16 %v159
    %v631 = vunpack.c.l.b16 %v160
    %v632 = vunpack.c.h.b16 %v160
    %v633 = vunpack.c.l.b16 %v161
    %v634 = vunpack.c.h.b16 %v161
    %v635 = vunpack.c.l.b16 %v162
    %v636 = vunpack.c.h.b16 %v162
    %v637 = vunpack.c.l.b16 %v163
    %v638 = vunpack.c.h.b16 %v163
    %v639 = vunpack.c.l.b16 %v164
    %v640 = vunpack.c.h.b16 %v164
    %v641 = vunpack.c.l.b16 %v165
    %v642 = vunpack.c.h.b16 %v165
    %v643 = vunpack.c.l.b16 %v166
    %v644 = vunpack.c.h.b16 %v166
    %v645 = vunpack.c.l.b16 %v167
    %v646 = vunpack.c.h.b16 %v167
    %v647 = vunpack.c.l.b16 %v168
    %v648 = vunpack.c.h.b16 %v168
    %v649 = vunpack.c.l.b16 %v169
    %v650 = vunpack.c.h.b16 %v169
    %v651 = vunpack.c.l.b16 %v170
    %v652 = vunpack.c.h.b16 %v170
    %v653 = vunpack.c.l.b16 %v171
    %v654 = vunpack.c.h.b16 %v171
    %v655 = vunpack.c.l.b16 %v172
    %v656 = vunpack.c.h.b16 %v172
    %v657 = vunpack.c.l.b16 %v173
    %v658 = vunpack.c.h.b16 %v173
    %v659 = vunpack.c.l.b16 %v174
    %v660 = vunpack.c.h.b16 %v174
    %v661 = vunpack.c.l.b16 %v175
    %v662 = vunpack.c.h.b16 %v175
    %v663 = vunpack.c.l.b16 %v176
    %v664 = vunpack.c.h.b16 %v176
    %v665 = vunpack.c.l.b16 %v177
    %v666 = vunpack.c.h.b16 %v177
    %v667 = vunpack.c.l.b16 %v178
    %v668 = vunpack.c.h.b16 %v178
    %v669 = vunpack.c.l.b16 %v179
    %v670 = vunpack.c.h.b16 %v179
    %v671 = vunpack.c.l.b16 %v180
    %v672 = vunpack.c.h.b16 %v180
    %v673 = vunpack.c.l.b16 %v181
    %v674 = vunpack.c.h.b16 %v181
    %v675 = vunpack.c.l.b16 %v182
    %v676 = vunpack.c.h.b16 %v182
    %v677 = vunpack.c.l.b16 %v183
    %v678 = vunpack.c.h.b16 %v183
    %v679 = vunpack.c.l.b16 %v184
    %v680 = vunpack.c.h.b16 %v184
    %v681 = vunpack.c.l.b16 %v185
    %v682 = vunpack.c.h.b16 %v185
    %v683 = vunpack.c.l.b16 %v186
    %v684 = vunpack.c.h.b16 %v186
    %v685 = vunpack.c.l.b16 %v187
    %v686 = vunpack.c.h.b16 %v187
    %v687 = vunpack.c.l.b16 %v188
    %v688 = vunpack.c.h.b16 %v188
    %v689 = vunpack.c.l.b16 %v189
    %v690 = vunpack.c.h.b16 %v189
    %v691 = vunpack.c.l.b16 %v190
    %v692 = vunpack.c.h.b16 %v190
    %v693 = vunpack.c.l.b16 %v191
    %v694 = vunpack.c.h.b16 %v191
    %v695 = vunpack.c.l.b16 %v192
    %v696 = vunpack.c.h.b16 %v192
    %v697 = vunpack.c.l.b16 %v193
    %v698 = vunpack.c.h.b16 %v193
    %v699 = vunpack.c.l.b16 %v194
    %v700 = vunpack.c.h.b16 %v194
    %v701 = vunpack.c.l.b16 %v195
    %v702 = vunpack.c.h.b16 %v195
    %v703 = vunpack.c.l.b16 %v196
    %v704 = vunpack.c.h.b16 %v196
    %v705 = vunpack.c.l.b16 %v197
    %v706 = vunpack.c.h.b16 %v197
    %v707 = vunpack.c.l.b16 %v198
    %v708 = vunpack.c.h.b16 %v198
    %v709 = vunpack.c.l.b16 %v199
    %v710 = vunpack.c.h.b16 %v199
    %v711 = vunpack.c.l.b16 %v200
    %v712 = vunpack.c.h.b16 %v200
    %v713 = vunpack.c.l.b16 %v201
    %v714 = vunpack.c.h.b16 %v201
    %v715 = vunpack.c.l.b16 %v202
    %v716 = vunpack.c.h.b16 %v202
    %v717 = vunpack.c.l.b16 %v203
    %v718 = vunpack.c.h.b16 %v203
    %v719 = vunpack.c.l.b16 %v204
    %v720 = vunpack.c.h.b16 %v204
    %v721 = vunpack.c.l.b16 %v205
    %v722 = vunpack.c.h.b16 %v205
    %v723 = vunpack.c.l.b16 %v206
    %v724 = vunpack.c.h.b16 %v206
    %v725 = vunpack.c.l.b16 %v207
    %v726 = vunpack.c.h.b16 %v207
    %v727 = vunpack.c.l.b16 %v208
    %v728 = vunpack.c.h.b16 %v208
    %v729 = vunpack.c.l.b16 %v209
    %v730 = vunpack.c.h.b16 %v209
    %v731 = vunpack.c.l.b16 %v210
    %v732 = vunpack.c.h.b16 %v210
    %v733 = vunpack.c.l.b16 %v211
    %v734 = vunpack.c.h.b16 %v211
    %v735 = vunpack.c.l.b16 %v212
    %v736 = vunpack.c.h.b16 %v212
    %v737 = vunpack.c.l.b16 %v213
    %v738 = vunpack.c.h.b16 %v213
    %v739 = vunpack.c.l.b16 %v214
    %v740 = vunpack.c.h.b16 %v214
    %v741 = vunpack.c.l.b16 %v215
    %v742 = vunpack.c.h.b16 %v215
    %v743 = vunpack.c.l.b16 %v216
    %v744 = vunpack.c.h.b16 %v216
    %v745 = vunpack.c.l.b16 %v217
    %v746 = vunpack.c.h.b16 %v217
    %v747 = vunpack.c.l.b16 %v218
    %v748 = vunpack.c.h.b16 %v218
    %v749 = vunpack.c.l.b16 %v219
    %v750 = vunpack.c.h.b16 %v219
    %v751 = vunpack.c.l.b16 %v220
    %v752 = vunpack.c.h.b16 %v220
    %v753 = vunpack.c.l.b16 %v221
    %v754 = vunpack.c.h.b16 %v221
    %v755 = vunpack.c.l.b16 %v222
    %v756 = vunpack.c.h.b16 %v222
    %v757 = vunpack.c.l.b16 %v223
    %v758 = vunpack.c.h.b16 %v223
    %v759 = vunpack.c.l.b16 %v224
    %v760 = vunpack.c.h.b16 %v224
    %v761 = vunpack.c.l.b16 %v225
    %v762 = vunpack.c.h.b16 %v225
    %v763 = vunpack.c.l.b16 %v226
    %v764 = vunpack.c.h.b16 %v226
    %v765 = vunpack.c.l.b16 %v227
    %v766 = vunpack.c.h.b16 %v227
    %v767 = vunpack.c.l.b16 %v228
    %v768 = vunpack.c.h.b16 %v228
    %v769 = vunpack.c.l.b16 %v229
    %v770 = vunpack.c.h.b16 %v229
    %v771 = vunpack.c.l.b16 %v230
    %v772 = vunpack.c.h.b16 %v230
    %v773 = vunpack.c.l.b16 %v231
    %v774 = vunpack.c.h.b16 %v231
    %v775 = vunpack.c.l.b16 %v232
    %v776 = vunpack.c.h.b16 %v232
    %v777 = vunpack.c.l.b16 %v233
    %v778 = vunpack.c.h.b16 %v233
    %v779 = vunpack.c.l.b16 %v234
    %v780 = vunpack.c.h.b16 %v234
    %v781 = vunpack.c.l.b16 %v235
    %v782 = vunpack.c.h.b16 %v235
    %v783 = vunpack.c.l.b16 %v236
    %v784 = vunpack.c.h.b16 %v236
    %v785 = vunpack.c.l.b16 %v237
    %v786 = vunpack.c.h.b16 %v237
    %v787 = vunpack.c.l.b16 %v238
    %v788 = vunpack.c.h.b16 %v238
    %v789 = vunpack.c.l.b16 %v239
    %v790 = vunpack.c.h.b16 %v239
    %v791 = vunpack.c.l.b16 %v240
    %v792 = vunpack.c.h.b16 %v240
    %v793 = vunpack.c.l.b16 %v241
    %v794 = vunpack.c.h.b16 %v241
    %v795 = vunpack.c.l.b16 %v242
    %v796 = vunpack.c.h.b16 %v242
    %v797 = vunpack.c.l.b16 %v243
    %v798 = vunpack.c.h.b16 %v243
    %v799 = vunpack.c.l.b16 %v244
    %v800 = vunpack.c.h.b16 %v244
    %v801 = vunpack.c.l.b16 %v245
    %v802 = vunpack.c.h.b16 %v245
    %v803 = vunpack.c.l.b16 %v246
    %v804 = vunpack.c.h.b16 %v246
    %v805 = vunpack.c.l.b16 %v247
    %v806 = vunpack.c.h.b16 %v247
    %v807 = vunpack.c.l.b16 %v248
    %v808 = vunpack.c.h.b16 %v248
    %v809 = vunpack.c.l.b16 %v249
    %v810 = vunpack.c.h.b16 %v249
    %v811 = vunpack.c.l.b16 %v250
    %v812 = vunpack.c.h.b16 %v250
    %v813 = vunpack.c.l.b16 %v251
    %v814 = vunpack.c.h.b16 %v251
    %v815 = vunpack.c.l.b16 %v252
    %v816 = vunpack.c.h.b16 %v252
    %v817 = vunpack.c.l.b16 %v253
    %v818 = vunpack.c.h.b16 %v253
    %v819 = vunpack.c.l.b16 %v254
    %v820 = vunpack.c.h.b16 %v254
    %v821 = vunpack.c.l.b16 %v255
    %v822 = vunpack.c.h.b16 %v255
    %v823 = vunpack.c.l.b16 %v256
    %v824 = vunpack.c.h.b16 %v256
    %v825 = vunpack.c.l.b16 %v257
    %v826 = vunpack.c.h.b16 %v257
    %v827 = vunpack.c.l.b16 %v258
    %v828 = vunpack.c.h.b16 %v258
    %v829 = vunpack.c.l.b16 %v259
    %v830 = vunpack.c.h.b16 %v259
    %v831 = vunpack.c.l.b16 %v260
    %v832 = vunpack.c.h.b16 %v260
    %v833 = vunpack.c.l.b16 %v261
    %v834 = vunpack.c.h.b16 %v261
    %v835 = vunpack.c.l.b16 %v262
    %v836 = vunpack.c.h.b16 %v262
    %v837 = vunpack.c.l.b16 %v263
    %v838 = vunpack.c.h.b16 %v263
    %v839 = vunpack.c.l.b16 %v264
    %v840 = vunpack.c.h.b16 %v264
    %v841 = vunpack.c.l.b16 %v265
    %v842 = vunpack.c.h.b16 %v265
    %v843 = vunpack.c.l.b16 %v266
    %v844 = vunpack.c.h.b16 %v266
    %v845 = vunpack.c.l.b16 %v267
    %v846 = vunpack.c.h.b16 %v267
    %v847 = vunpack.c.l.b16 %v268
    %v848 = vunpack.c.h.b16 %v268
    %v849 = vunpack.c.l.b16 %v269
    %v850 = vunpack.c.h.b16 %v269
    %v851 = vunpack.c.l.b16 %v270
    %v852 = vunpack.c.h.b16 %v270
    %v853 = vunpack.c.l.b16 %v271
    %v854 = vunpack.c.h.b16 %v271
    %v855 = vunpack.c.l.b16 %v272
    %v856 = vunpack.c.h.b16 %v272
    %v857 = vunpack.c.l.b16 %v273
    %v858 = vunpack.c.h.b16 %v273
    %v859 = vunpack.c.l.b16 %v274
    %v860 = vunpack.c.h.b16 %v274
    %v861 = vunpack.c.l.b16 %v275
    %v862 = vunpack.c.h.b16 %v275
    %v863 = vunpack.c.l.b16 %v276
    %v864 = vunpack.c.h.b16 %v276
    %v865 = vunpack.c.l.b16 %v277
    %v866 = vunpack.c.h.b16 %v277
    %v867 = vunpack.c.l.b16 %v278
    %v868 = vunpack.c.h.b16 %v278
    %v869 = vunpack.c.l.b16 %v279
    %v870 = vunpack.c.h.b16 %v279
    %v871 = vunpack.c.l.b16 %v280
    %v872 = vunpack.c.h.b16 %v280
    %v873 = vunpack.c.l.b16 %v281
    %v874 = vunpack.c.h.b16 %v281
    %v875 = vunpack.c.l.b16 %v282
    %v876 = vunpack.c.h.b16 %v282
    %v877 = vunpack.c.l.b16 %v283
    %v878 = vunpack.c.h.b16 %v283
    %v879 = vunpack.c.l.b16 %v284
    %v880 = vunpack.c.h.b16 %v284
    %v881 = vunpack.c.l.b16 %v285
    %v882 = vunpack.c.h.b16 %v285
    %v883 = vunpack.c.l.b16 %v286
    %v884 = vunpack.c.h.b16 %v286
    %v885 = vunpack.c.l.b16 %v287
    %v886 = vunpack.c.h.b16 %v287
    %v887 = vunpack.c.l.b16 %v288
    %v888 = vunpack.c.h.b16 %v288
    %v889 = vunpack.c.l.b16 %v289
    %v890 = vunpack.c.h.b16 %v289
    %v891 = vunpack.c.l.b16 %v290
    %v892 = vunpack.c.h.b16 %v290
    %v893 = vunpack.c.l.b16 %v291
    %v894 = vunpack.c.h.b16 %v291
    %v895 = vunpack.c.l.b16 %v292
    %v896 = vunpack.c.h.b16 %v292
    %v897 = vunpack.c.l.b16 %v293
    %v898 = vunpack.c.h.b16 %v293
    %v899 = vunpack.c.l.b16 %v294
    %v900 = vunpack.c.h.b16 %v294
    %v901 = vunpack.c.l.b16 %v295
    %v902 = vunpack.c.h.b16 %v295
    %v903 = vpack.c.b16 %v523, %v519
    %v904 = vpack.c.b16 %v524, %v520
    %v905 = vpack.c.b16 %v525, %v521
    %v906 = vpack.c.b16 %v526, %v522
    %v907 = vpack.c.b16 %v531, %v527
    %v908 = vpack.c.b16 %v532, %v528
    %v909 = vpack.c.b16 %v533, %v529
    %v910 = vpack.c.b16 %v534, %v530
    %v911 = vpack.c.b16 %v539, %v535
    %v912 = vpack.c.b16 %v540, %v536
    %v913 = vpack.c.b16 %v541, %v537
    %v914 = vpack.c.b16 %v542, %v538
    %v915 = vpack.c.b16 %v547, %v543
    %v916 = vpack.c.b16 %v548, %v544
    %v917 = vpack.c.b16 %v549, %v545
    %v918 = vpack.c.b16 %v550, %v546
    %v919 = vpack.c.b16 %v555, %v551
    %v920 = vpack.c.b16 %v556, %v552
    %v921 = vpack.c.b16 %v557, %v553
    %v922 = vpack.c.b16 %v558, %v554
    %v923 = vpack.c.b16 %v563, %v559
    %v924 = vpack.c.b16 %v564, %v560
    %v925 = vpack.c.b16 %v565, %v561
    %v926 = vpack.c.b16 %v566, %v562
    %v927 = vpack.c.b16 %v571, %v567
    %v928 = vpack.c.b16 %v572, %v568
    %v929 = vpack.c.b16 %v573, %v569
    %v930 = vpack.c.b16 %v574, %v570
    %v931 = vpack.c.b16 %v579, %v575
    %v932 = vpack.c.b16 %v580, %v576
    %v933 = vpack.c.b16 %v581, %v577
    %v934 = vpack.c.b16 %v582, %v578
    %v935 = vpack.c.b16 %v587, %v583
    %v936 = vpack.c.b16 %v588, %v584
    %v937 = vpack.c.b16 %v589, %v585
    %v938 = vpack.c.b16 %v590, %v586
    %v939 = vpack.c.b16 %v595, %v591
    %v940 = vpack.c.b16 %v596, %v592
    %v941 = vpack.c.b16 %v597, %v593
    %v942 = vpack.c.b16 %v598, %v594
    %v943 = vpack.c.b16 %v603, %v599
    %v944 = vpack.c.b16 %v604, %v600
    %v945 = vpack.c.b16 %v605, %v601
    %v946 = vpack.c.b16 %v606, %v602
    %v947 = vpack.c.b16 %v611, %v607
    %v948 = vpack.c.b16 %v612, %v608
    %v949 = vpack.c.b16 %v613, %v609
    %v950 = vpack.c.b16 %v614, %v610
    %v951 = vpack.c.b16 %v619, %v615
    %v952 = vpack.c.b16 %v620, %v616
    %v953 = vpack.c.b16 %v621, %v617
    %v954 = vpack.c.b16 %v622, %v618
    %v955 = vpack.c.b16 %v627, %v623
    %v956 = vpack.c.b16 %v628, %v624
    %v957 = vpack.c.b16 %v629, %v625
    %v958 = vpack.c.b16 %v630, %v626
    %v959 = vpack.c.b16 %v635, %v631
    %v960 = vpack.c.b16 %v636, %v632
    %v961 = vpack.c.b16 %v637, %v633
    %v962 = vpack.c.b16 %v638, %v634
    %v963 = vpack.c.b16 %v643, %v639
    %v964 = vpack.c.b16 %v644, %v640
    %v965 = vpack.c.b16 %v645, %v641
    %v966 = vpack.c.b16 %v646, %v642
    %v967 = vpack.c.b16 %v651, %v647
    %v968 = vpack.c.b16 %v652, %v648
    %v969 = vpack.c.b16 %v653, %v649
    %v970 = vpack.c.b16 %v654, %v650
    %v971 = vpack.c.b16 %v659, %v655
    %v972 = vpack.c.b16 %v660, %v656
    %v973 = vpack.c.b16 %v661, %v657
    %v974 = vpack.c.b16 %v662, %v658
    %v975 = vpack.c.b16 %v667, %v663
    %v976 = vpack.c.b16 %v668, %v664
    %v977 = vpack.c.b16 %v669, %v665
    %v978 = vpack.c.b16 %v670, %v666
    %v979 = vpack.c.b16 %v675, %v671
    %v980 = vpack.c.b16 %v676, %v672
    %v981 = vpack.c.b16 %v677, %v673
    %v982 = vpack.c.b16 %v678, %v674
    %v983 = vpack.c.b16 %v683, %v679
    %v984 = vpack.c.b16 %v684, %v680
    %v985 = vpack.c.b16 %v685, %v681
    %v986 = vpack.c.b16 %v686, %v682
    %v987 = vpack.c.b16 %v691, %v687
    %v988 = vpack.c.b16 %v692, %v688
    %v989 = vpack.c.b16 %v693, %v689
    %v990 = vpack.c.b16 %v694, %v690
    %v991 = vpack.c.b16 %v699, %v695
    %v992 = vpack.c.b16 %v700, %v696
    %v993 = vpack.c.b16 %v701, %v697
    %v994 = vpack.c.b16 %v702, %v698
    %v995 = vpack.c.b16 %v707, %v703
    %v996 = vpack.c.b16 %v708, %v704
    %v997 = vpack.c.b16 %v709, %v705
    %v998 = vpack.c.b16 %v710, %v706
    %v999 = vpack.c.b16 %v715, %v711
    %v1000 = vpack.c.b16 %v716, %v712
    %v1001 = vpack.c.b16 %v717, %v713
    %v1002 = vpack.c.b16 %v718, %v714
    %v1003 = vpack.c.b16 %v723, %v719
    %v1004 = vpack.c.b16 %v724, %v720
    %v1005 = vpack.c.b16 %v725, %v721
    %v1006 = vpack.c.b16 %v726, %v722
    %v1007 = vpack.c.b16 %v731, %v727
    %v1008 = vpack.c.b16 %v732, %v728
    %v1009 = vpack.c.b16 %v733, %v729
    %v1010 = vpack.c.b16 %v734, %v730
    %v1011 = vpack.c.b16 %v739, %v735
    %v1012 = vpack.c.b16 %v740, %v736
    %v1013 = vpack.c.b16 %v741, %v737
    %v1014 = vpack.c.b16 %v742, %v738
    %v1015 = vpack.c.b16 %v747, %v743
    %v1016 = vpack.c.b16 %v748, %v744
    %v1017 = vpack.c.b16 %v749, %v745
    %v1018 = vpack.c.b16 %v750, %v746
    %v1019 = vpack.c.b16 %v755, %v751
    %v1020 = vpack.c.b16 %v756, %v752
    %v1021 = vpack.c.b16 %v757, %v753
    %v1022 = vpack.c.b16 %v758, %v754
    %v1023 = vpack.c.b16 %v763, %v759
    %v1024 = vpack.c.b16 %v764, %v760
    %v1025 = vpack.c.b16 %v765, %v761
    %v1026 = vpack.c.b16 %v766, %v762
    %v1027 = vpack.c.b16 %v771, %v767
    %v1028 = vpack.c.b16 %v772, %v768
    %v1029 = vpack.c.b16 %v773, %v769
    %v1030 = vpack.c.b16 %v774, %v770
    %v1031 = vpack.c.b16 %v779, %v775
    %v1032 = vpack.c.b16 %v780, %v776
    %v1033 = vpack.c.b16 %v781, %v777
    %v1034 = vpack.c.b16 %v782, %v778
    %v1035 = vpack.c.b16 %v787, %v783
    %v1036 = vpack.c.b16 %v788, %v784
    %v1037 = vpack.c.b16 %v789, %v785
    %v1038 = vpack.c.b16 %v790, %v786
    %v1039 = vpack.c.b16 %v795, %v791
    %v1040 = vpack.c.b16 %v796, %v792
    %v1041 = vpack.c.b16 %v797, %v793
    %v1042 = vpack.c.b16 %v798, %v794
    %v1043 = vpack.c.b16 %v803, %v799
    %v1044 = vpack.c.b16 %v804, %v800
    %v1045 = vpack.c.b16 %v805, %v801
    %v1046 = vpack.c.b16 %v806, %v802
    %v1047 = vpack.c.b16 %v811, %v807
    %v1048 = vpack.c.b16 %v812, %v808
    %v1049 = vpack.c.b16 %v813, %v809
    %v1050 = vpack.c.b16 %v814, %v810
    %v1051 = vpack.c.b16 %v819, %v815
    %v1052 = vpack.c.b16 %v820, %v816
    %v1053 = vpack.c.b16 %v821, %v817
    %v1054 = vpack.c.b16 %v822, %v818
    %v1055 = vpack.c.b16 %v827, %v823
    %v1056 = vpack.c.b16 %v828, %v824
    %v1057 = vpack.c.b16 %v829, %v825
    %v1058 = vpack.c.b16 %v830, %v826
    %v1059 = vpack.c.b16 %v835, %v831
    %v1060 = vpack.c.b16 %v836, %v832
    %v1061 = vpack.c.b16 %v837, %v833
    %v1062 = vpack.c.b16 %v838, %v834
    %v1063 = vpack.c.b16 %v843, %v839
    %v1064 = vpack.c.b16 %v844, %v840
    %v1065 = vpack.c.b16 %v845, %v841
    %v1066 = vpack.c.b16 %v846, %v842
    %v1067 = vpack.c.b16 %v851, %v847
    %v1068 = vpack.c.b16 %v852, %v848
    %v1069 = vpack.c.b16 %v853, %v849
    %v1070 = vpack.c.b16 %v854, %v850
    %v1071 = vpack.c.b16 %v859, %v855
    %v1072 = vpack.c.b16 %v860, %v856
    %v1073 = vpack.c.b16 %v861, %v857
    %v1074 = vpack.c.b16 %v862, %v858
    %v1075 = vpack.c.b16 %v867, %v863
    %v1076 = vpack.c.b16 %v868, %v864
    %v1077 = vpack.c.b16 %v869, %v865
    %v1078 = vpack.c.b16 %v870, %v866
    %v1079 = vpack.c.b16 %v875, %v871
    %v1080 = vpack.c.b16 %v876, %v872
    %v1081 = vpack.c.b16 %v877, %v873
    %v1082 = vpack.c.b16 %v878, %v874
    %v1083 = vpack.c.b16 %v883, %v879
    %v1084 = vpack.c.b16 %v884, %v880
    %v1085 = vpack.c.b16 %v885, %v881
    %v1086 = vpack.c.b16 %v886, %v882
    %v1087 = vpack.c.b16 %v891, %v887
    %v1088 = vpack.c.b16 %v892, %v888
    %v1089 = vpack.c.b16 %v893, %v889
    %v1090 = vpack.c.b16 %v894, %v890
    %v1091 = vpack.c.b16 %v899, %v895
    %v1092 = vpack.c.b16 %v900, %v896
    %v1093 = vpack.c.b16 %v901, %v897
    %v1094 = vpack.c.b16 %v902, %v898
    %1287 = vmatpush.bf16.msra.mxu0 %v931
    %1288 = vmatpush.bf16.msra.mxu0 %v927
    %1289 = vmatpush.bf16.msra.mxu0 %v923
    %1290 = vmatpush.bf16.msra.mxu0 %v919
    %1291 = vmatpush.bf16.msra.mxu0 %v915
    %1292 = vmatpush.bf16.msra.mxu0 %v911
    %1293 = vmatpush.bf16.msra.mxu0 %v907
    %1294 = vmatpush.bf16.msra.mxu0 %v903
    %1295 = vmatmul.bf16.gmra.mxu0 %v315
    %v1296 = vpop.f32.mrf.mxu0
    %v1297 = vadd.f32 %v298, %v1296
    %v1298 = vpop.f32.mrf.mxu0
    %1299 = vdwg.mxu0
    %1300 = vmatpush.bf16.msra.mxu0 %v963
    %1301 = vmatpush.bf16.msra.mxu0 %v959
    %1302 = vmatpush.bf16.msra.mxu0 %v955
    %1303 = vmatpush.bf16.msra.mxu0 %v951
    %1304 = vmatpush.bf16.msra.mxu0 %v947
    %1305 = vmatpush.bf16.msra.mxu0 %v943
    %1306 = vmatpush.bf16.msra.mxu0 %v939
    %1307 = vmatpush.bf16.msra.mxu0 %v935
    %1308 = vmatmul.bf16.gmra.mxu0 %v316
    %v1309 = vpop.f32.mrf.mxu0
    %v1310 = vadd.f32 %v1297, %v1309
    %v1311 = vpop.f32.mrf.mxu0
    %1312 = vdwg.mxu0
    %1313 = vmatpush.bf16.msra.mxu0 %v995
    %1314 = vmatpush.bf16.msra.mxu0 %v991
    %1315 = vmatpush.bf16.msra.mxu0 %v987
    %1316 = vmatpush.bf16.msra.mxu0 %v983
    %1317 = vmatpush.bf16.msra.mxu0 %v979
    %1318 = vmatpush.bf16.msra.mxu0 %v975
    %1319 = vmatpush.bf16.msra.mxu0 %v971
    %1320 = vmatpush.bf16.msra.mxu0 %v967
    %1321 = vmatmul.bf16.gmra.mxu0 %v317
    %v1322 = vpop.f32.mrf.mxu0
    %v1323 = vadd.f32 %v1310, %v1322
    %v1324 = vpop.f32.mrf.mxu0
    %1325 = vdwg.mxu0
    %1326 = vmatpush.bf16.msra.mxu0 %v1027
    %1327 = vmatpush.bf16.msra.mxu0 %v1023
    %1328 = vmatpush.bf16.msra.mxu0 %v1019
    %1329 = vmatpush.bf16.msra.mxu0 %v1015
    %1330 = vmatpush.bf16.msra.mxu0 %v1011
    %1331 = vmatpush.bf16.msra.mxu0 %v1007
    %1332 = vmatpush.bf16.msra.mxu0 %v1003
    %1333 = vmatpush.bf16.msra.mxu0 %v999
    %1334 = vmatmul.bf16.gmra.mxu0 %v318
    %v1335 = vpop.f32.mrf.mxu0
    %v1336 = vadd.f32 %v1323, %v1335
    %v1337 = vpop.f32.mrf.mxu0
    %1338 = vdwg.mxu0
    %1339 = vmatpush.bf16.msra.mxu0 %v1059
    %1340 = vmatpush.bf16.msra.mxu0 %v1055
    %1341 = vmatpush.bf16.msra.mxu0 %v1051
    %1342 = vmatpush.bf16.msra.mxu0 %v1047
    %1343 = vmatpush.bf16.msra.mxu0 %v1043
    %1344 = vmatpush.bf16.msra.mxu0 %v1039
    %1345 = vmatpush.bf16.msra.mxu0 %v1035
    %1346 = vmatpush.bf16.msra.mxu0 %v1031
    %1347 = vmatmul.bf16.gmra.mxu0 %v319
    %v1348 = vpop.f32.mrf.mxu0
    %v1349 = vadd.f32 %v1336, %v1348
    %v1350 = vpop.f32.mrf.mxu0
    %1351 = vdwg.mxu0
    %1352 = vmatpush.bf16.msra.mxu0 %v1091
    %1353 = vmatpush.bf16.msra.mxu0 %v1087
    %1354 = vmatpush.bf16.msra.mxu0 %v1083
    %1355 = vmatpush.bf16.msra.mxu0 %v1079
    %1356 = vmatpush.bf16.msra.mxu0 %v1075
    %1357 = vmatpush.bf16.msra.mxu0 %v1071
    %1358 = vmatpush.bf16.msra.mxu0 %v1067
    %1359 = vmatpush.bf16.msra.mxu0 %v1063
    %1360 = vmatmul.bf16.gmra.mxu0 %v320
    %v1361 = vpop.f32.mrf.mxu0
    %v1362 = vadd.f32 %v1349, %v1361
    %v1363 = vpop.f32.mrf.mxu0
    %1364 = vdwg.mxu0
    %1365 = vmatpush.bf16.msra.mxu0 %v932
    %1366 = vmatpush.bf16.msra.mxu0 %v928
    %1367 = vmatpush.bf16.msra.mxu0 %v924
    %1368 = vmatpush.bf16.msra.mxu0 %v920
    %1369 = vmatpush.bf16.msra.mxu0 %v916
    %1370 = vmatpush.bf16.msra.mxu0 %v912
    %1371 = vmatpush.bf16.msra.mxu0 %v908
    %1372 = vmatpush.bf16.msra.mxu0 %v904
    %1373 = vmatmul.bf16.gmra.mxu0 %v315
    %v1374 = vpop.f32.mrf.mxu0
    %v1375 = vadd.f32 %v299, %v1374
    %v1376 = vpop.f32.mrf.mxu0
    %1377 = vdwg.mxu0
    %1378 = vmatpush.bf16.msra.mxu0 %v964
    %1379 = vmatpush.bf16.msra.mxu0 %v960
    %1380 = vmatpush.bf16.msra.mxu0 %v956
    %1381 = vmatpush.bf16.msra.mxu0 %v952
    %1382 = vmatpush.bf16.msra.mxu0 %v948
    %1383 = vmatpush.bf16.msra.mxu0 %v944
    %1384 = vmatpush.bf16.msra.mxu0 %v940
    %1385 = vmatpush.bf16.msra.mxu0 %v936
    %1386 = vmatmul.bf16.gmra.mxu0 %v316
    %v1387 = vpop.f32.mrf.mxu0
    %v1388 = vadd.f32 %v1375, %v1387
    %v1389 = vpop.f32.mrf.mxu0
    %1390 = vdwg.mxu0
    %1391 = vmatpush.bf16.msra.mxu0 %v996
    %1392 = vmatpush.bf16.msra.mxu0 %v992
    %1393 = vmatpush.bf16.msra.mxu0 %v988
    %1394 = vmatpush.bf16.msra.mxu0 %v984
    %1395 = vmatpush.bf16.msra.mxu0 %v980
    %1396 = vmatpush.bf16.msra.mxu0 %v976
    %1397 = vmatpush.bf16.msra.mxu0 %v972
    %1398 = vmatpush.bf16.msra.mxu0 %v968
    %1399 = vmatmul.bf16.gmra.mxu0 %v317
    %v1400 = vpop.f32.mrf.mxu0
    %v1401 = vadd.f32 %v1388, %v1400
    %v1402 = vpop.f32.mrf.mxu0
    %1403 = vdwg.mxu0
    %1404 = vmatpush.bf16.msra.mxu0 %v1028
    %1405 = vmatpush.bf16.msra.mxu0 %v1024
    %1406 = vmatpush.bf16.msra.mxu0 %v1020
    %1407 = vmatpush.bf16.msra.mxu0 %v1016
    %1408 = vmatpush.bf16.msra.mxu0 %v1012
    %1409 = vmatpush.bf16.msra.mxu0 %v1008
    %1410 = vmatpush.bf16.msra.mxu0 %v1004
    %1411 = vmatpush.bf16.msra.mxu0 %v1000
    %1412 = vmatmul.bf16.gmra.mxu0 %v318
    %v1413 = vpop.f32.mrf.mxu0
    %v1414 = vadd.f32 %v1401, %v1413
    %v1415 = vpop.f32.mrf.mxu0
    %1416 = vdwg.mxu0
    %1417 = vmatpush.bf16.msra.mxu0 %v1060
    %1418 = vmatpush.bf16.msra.mxu0 %v1056
    %1419 = vmatpush.bf16.msra.mxu0 %v1052
    %1420 = vmatpush.bf16.msra.mxu0 %v1048
    %1421 = vmatpush.bf16.msra.mxu0 %v1044
    %1422 = vmatpush.bf16.msra.mxu0 %v1040
    %1423 = vmatpush.bf16.msra.mxu0 %v1036
    %1424 = vmatpush.bf16.msra.mxu0 %v1032
    %1425 = vmatmul.bf16.gmra.mxu0 %v319
    %v1426 = vpop.f32.mrf.mxu0
    %v1427 = vadd.f32 %v1414, %v1426
    %v1428 = vpop.f32.mrf.mxu0
    %1429 = vdwg.mxu0
    %1430 = vmatpush.bf16.msra.mxu0 %v1092
    %1431 = vmatpush.bf16.msra.mxu0 %v1088
    %1432 = vmatpush.bf16.msra.mxu0 %v1084
    %1433 = vmatpush.bf16.msra.mxu0 %v1080
    %1434 = vmatpush.bf16.msra.mxu0 %v1076
    %1435 = vmatpush.bf16.msra.mxu0 %v1072
    %1436 = vmatpush.bf16.msra.mxu0 %v1068
    %1437 = vmatpush.bf16.msra.mxu0 %v1064
    %1438 = vmatmul.bf16.gmra.mxu0 %v320
    %v1439 = vpop.f32.mrf.mxu0
    %v1440 = vadd.f32 %v1427, %v1439
    %v1441 = vpop.f32.mrf.mxu0
    %1442 = vdwg.mxu0
    %1443 = vmatpush.bf16.msra.mxu0 %v933
    %1444 = vmatpush.bf16.msra.mxu0 %v929
    %1445 = vmatpush.bf16.msra.mxu0 %v925
    %1446 = vmatpush.bf16.msra.mxu0 %v921
    %1447 = vmatpush.bf16.msra.mxu0 %v917
    %1448 = vmatpush.bf16.msra.mxu0 %v913
    %1449 = vmatpush.bf16.msra.mxu0 %v909
    %1450 = vmatpush.bf16.msra.mxu0 %v905
    %1451 = vmatmul.bf16.gmra.mxu0 %v315
    %v1452 = vpop.f32.mrf.mxu0
    %v1453 = vadd.f32 %v300, %v1452
    %v1454 = vpop.f32.mrf.mxu0
    %1455 = vdwg.mxu0
    %1456 = vmatpush.bf16.msra.mxu0 %v965
    %1457 = vmatpush.bf16.msra.mxu0 %v961
    %1458 = vmatpush.bf16.msra.mxu0 %v957
    %1459 = vmatpush.bf16.msra.mxu0 %v953
    %1460 = vmatpush.bf16.msra.mxu0 %v949
    %1461 = vmatpush.bf16.msra.mxu0 %v945
    %1462 = vmatpush.bf16.msra.mxu0 %v941
    %1463 = vmatpush.bf16.msra.mxu0 %v937
    %1464 = vmatmul.bf16.gmra.mxu0 %v316
    %v1465 = vpop.f32.mrf.mxu0
    %v1466 = vadd.f32 %v1453, %v1465
    %v1467 = vpop.f32.mrf.mxu0
    %1468 = vdwg.mxu0
    %1469 = vmatpush.bf16.msra.mxu0 %v997
    %1470 = vmatpush.bf16.msra.mxu0 %v993
    %1471 = vmatpush.bf16.msra.mxu0 %v989
    %1472 = vmatpush.bf16.msra.mxu0 %v985
    %1473 = vmatpush.bf16.msra.mxu0 %v981
    %1474 = vmatpush.bf16.msra.mxu0 %v977
    %1475 = vmatpush.bf16.msra.mxu0 %v973
    %1476 = vmatpush.bf16.msra.mxu0 %v969
    %1477 = vmatmul.bf16.gmra.mxu0 %v317
    %v1478 = vpop.f32.mrf.mxu0
    %v1479 = vadd.f32 %v1466, %v1478
    %v1480 = vpop.f32.mrf.mxu0
    %1481 = vdwg.mxu0
    %1482 = vmatpush.bf16.msra.mxu0 %v1029
    %1483 = vmatpush.bf16.msra.mxu0 %v1025
    %1484 = vmatpush.bf16.msra.mxu0 %v1021
    %1485 = vmatpush.bf16.msra.mxu0 %v1017
    %1486 = vmatpush.bf16.msra.mxu0 %v1013
    %1487 = vmatpush.bf16.msra.mxu0 %v1009
    %1488 = vmatpush.bf16.msra.mxu0 %v1005
    %1489 = vmatpush.bf16.msra.mxu0 %v1001
    %1490 = vmatmul.bf16.gmra.mxu0 %v318
    %v1491 = vpop.f32.mrf.mxu0
    %v1492 = vadd.f32 %v1479, %v1491
    %v1493 = vpop.f32.mrf.mxu0
    %1494 = vdwg.mxu0
    %1495 = vmatpush.bf16.msra.mxu0 %v1061
    %1496 = vmatpush.bf16.msra.mxu0 %v1057
    %1497 = vmatpush.bf16.msra.mxu0 %v1053
    %1498 = vmatpush.bf16.msra.mxu0 %v1049
    %1499 = vmatpush.bf16.msra.mxu0 %v1045
    %1500 = vmatpush.bf16.msra.mxu0 %v1041
    %1501 = vmatpush.bf16.msra.mxu0 %v1037
    %1502 = vmatpush.bf16.msra.mxu0 %v1033
    %1503 = vmatmul.bf16.gmra.mxu0 %v319
    %v1504 = vpop.f32.mrf.mxu0
    %v1505 = vadd.f32 %v1492, %v1504
    %v1506 = vpop.f32.mrf.mxu0
    %1507 = vdwg.mxu0
    %1508 = vmatpush.bf16.msra.mxu0 %v1093
    %1509 = vmatpush.bf16.msra.mxu0 %v1089
    %1510 = vmatpush.bf16.msra.mxu0 %v1085
    %1511 = vmatpush.bf16.msra.mxu0 %v1081
    %1512 = vmatpush.bf16.msra.mxu0 %v1077
    %1513 = vmatpush.bf16.msra.mxu0 %v1073
    %1514 = vmatpush.bf16.msra.mxu0 %v1069
    %1515 = vmatpush.bf16.msra.mxu0 %v1065
    %1516 = vmatmul.bf16.gmra.mxu0 %v320
    %v1517 = vpop.f32.mrf.mxu0
    %v1518 = vadd.f32 %v1505, %v1517
    %v1519 = vpop.f32.mrf.mxu0
    %1520 = vdwg.mxu0
    %1521 = vmatpush.bf16.msra.mxu0 %v934
    %1522 = vmatpush.bf16.msra.mxu0 %v930
    %1523 = vmatpush.bf16.msra.mxu0 %v926
    %1524 = vmatpush.bf16.msra.mxu0 %v922
    %1525 = vmatpush.bf16.msra.mxu0 %v918
    %1526 = vmatpush.bf16.msra.mxu0 %v914
    %1527 = vmatpush.bf16.msra.mxu0 %v910
    %1528 = vmatpush.bf16.msra.mxu0 %v906
    %1529 = vmatmul.bf16.gmra.mxu0 %v315
    %v1530 = vpop.f32.mrf.mxu0
    %v1531 = vadd.f32 %v301, %v1530
    %v1532 = vpop.f32.mrf.mxu0
    %1533 = vdwg.mxu0
    %1534 = vmatpush.bf16.msra.mxu0 %v966
    %1535 = vmatpush.bf16.msra.mxu0 %v962
    %1536 = vmatpush.bf16.msra.mxu0 %v958
    %1537 = vmatpush.bf16.msra.mxu0 %v954
    %1538 = vmatpush.bf16.msra.mxu0 %v950
    %1539 = vmatpush.bf16.msra.mxu0 %v946
    %1540 = vmatpush.bf16.msra.mxu0 %v942
    %1541 = vmatpush.bf16.msra.mxu0 %v938
    %1542 = vmatmul.bf16.gmra.mxu0 %v316
    %v1543 = vpop.f32.mrf.mxu0
    %v1544 = vadd.f32 %v1531, %v1543
    %v1545 = vpop.f32.mrf.mxu0
    %1546 = vdwg.mxu0
    %1547 = vmatpush.bf16.msra.mxu0 %v998
    %1548 = vmatpush.bf16.msra.mxu0 %v994
    %1549 = vmatpush.bf16.msra.mxu0 %v990
    %1550 = vmatpush.bf16.msra.mxu0 %v986
    %1551 = vmatpush.bf16.msra.mxu0 %v982
    %1552 = vmatpush.bf16.msra.mxu0 %v978
    %1553 = vmatpush.bf16.msra.mxu0 %v974
    %1554 = vmatpush.bf16.msra.mxu0 %v970
    %1555 = vmatmul.bf16.gmra.mxu0 %v317
    %v1556 = vpop.f32.mrf.mxu0
    %v1557 = vadd.f32 %v1544, %v1556
    %v1558 = vpop.f32.mrf.mxu0
    %1559 = vdwg.mxu0
    %1560 = vmatpush.bf16.msra.mxu0 %v1030
    %1561 = vmatpush.bf16.msra.mxu0 %v1026
    %1562 = vmatpush.bf16.msra.mxu0 %v1022
    %1563 = vmatpush.bf16.msra.mxu0 %v1018
    %1564 = vmatpush.bf16.msra.mxu0 %v1014
    %1565 = vmatpush.bf16.msra.mxu0 %v1010
    %1566 = vmatpush.bf16.msra.mxu0 %v1006
    %1567 = vmatpush.bf16.msra.mxu0 %v1002
    %1568 = vmatmul.bf16.gmra.mxu0 %v318
    %v1569 = vpop.f32.mrf.mxu0
    %v1570 = vadd.f32 %v1557, %v1569
    %v1571 = vpop.f32.mrf.mxu0
    %1572 = vdwg.mxu0
    %1573 = vmatpush.bf16.msra.mxu0 %v1062
    %1574 = vmatpush.bf16.msra.mxu0 %v1058
    %1575 = vmatpush.bf16.msra.mxu0 %v1054
    %1576 = vmatpush.bf16.msra.mxu0 %v1050
    %1577 = vmatpush.bf16.msra.mxu0 %v1046
    %1578 = vmatpush.bf16.msra.mxu0 %v1042
    %1579 = vmatpush.bf16.msra.mxu0 %v1038
    %1580 = vmatpush.bf16.msra.mxu0 %v1034
    %1581 = vmatmul.bf16.gmra.mxu0 %v319
    %v1582 = vpop.f32.mrf.mxu0
    %v1583 = vadd.f32 %v1570, %v1582
    %v1584 = vpop.f32.mrf.mxu0
    %1585 = vdwg.mxu0
    %1586 = vmatpush.bf16.msra.mxu0 %v1094
    %1587 = vmatpush.bf16.msra.mxu0 %v1090
    %1588 = vmatpush.bf16.msra.mxu0 %v1086
    %1589 = vmatpush.bf16.msra.mxu0 %v1082
    %1590 = vmatpush.bf16.msra.mxu0 %v1078
    %1591 = vmatpush.bf16.msra.mxu0 %v1074
    %1592 = vmatpush.bf16.msra.mxu0 %v1070
    %1593 = vmatpush.bf16.msra.mxu0 %v1066
    %1594 = vmatmul.bf16.gmra.mxu0 %v320
    %v1595 = vpop.f32.mrf.mxu0
    %v1596 = vadd.f32 %v1583, %v1595
    %v1597 = vpop.f32.mrf.mxu0
    %1598 = vdwg.mxu0
    %v1599 = vmax.f32 %v1362, 0.0
    %v1600 = vmax.f32 %v1440, 0.0
    %v1601 = vmax.f32 %v1518, 0.0
    %v1602 = vmax.f32 %v1596, 0.0
    %v1603 = vpack.c.bf16 %v1599, %v1599
    %v1604 = vpack.c.bf16 %v1600, %v1600
    %v1605 = vpack.c.bf16 %v1601, %v1601
    %v1606 = vpack.c.bf16 %v1602, %v1602
    %v1607 = vld [vmem:[#allocation8] sm:$0xff]
    %v1608 = vld [vmem:[#allocation8 + $0x8] sm:$0xff]
    %v1609 = vld [vmem:[#allocation8 + $0x10] sm:$0xff]
    %v1610 = vld [vmem:[#allocation8 + $0x18] sm:$0xff]
    %v1611 = vld [vmem:[#allocation8 + $0x20] sm:$0xff]
    %v1612 = vld [vmem:[#allocation8 + $0x28] sm:$0xff]
    %v1613 = vld [vmem:[#allocation8 + $0x30] sm:$0xff]
    %v1614 = vld [vmem:[#allocation8 + $0x38] sm:$0xff]
    %v1615 = vld [vmem:[#allocation8 + $0x40] sm:$0xff]
    %v1616 = vld [vmem:[#allocation8 + $0x48] sm:$0xff]
    %v1617 = vld [vmem:[#allocation8 + $0x50] sm:$0xff]
    %v1618 = vld [vmem:[#allocation8 + $0x58] sm:$0xff]
    %v1619 = vld [vmem:[#allocation8 + $0x60] sm:$0xff]
    %v1620 = vld [vmem:[#allocation8 + $0x68] sm:$0xff]
    %v1621 = vld [vmem:[#allocation8 + $0x70] sm:$0xff]
    %v1622 = vld [vmem:[#allocation8 + $0x78] sm:$0xff]
    %v1623 = vld [vmem:[#allocation8 + $0x80] sm:$0xff]
    %v1624 = vld [vmem:[#allocation8 + $0x88] sm:$0xff]
    %v1625 = vld [vmem:[#allocation8 + $0x90] sm:$0xff]
    %v1626 = vld [vmem:[#allocation8 + $0x98] sm:$0xff]
    %v1627 = vld [vmem:[#allocation8 + $0xa0] sm:$0xff]
    %v1628 = vld [vmem:[#allocation8 + $0xa8] sm:$0xff]
    %v1629 = vld [vmem:[#allocation8 + $0xb0] sm:$0xff]
    %v1630 = vld [vmem:[#allocation8 + $0xb8] sm:$0xff]
    %v1631 = vld [vmem:[#allocation8 + $0xc0] sm:$0xff]
    %v1632 = vld [vmem:[#allocation8 + $0xc8] sm:$0xff]
    %v1633 = vld [vmem:[#allocation8 + $0xd0] sm:$0xff]
    %v1634 = vld [vmem:[#allocation8 + $0xd8] sm:$0xff]
    %v1635 = vld [vmem:[#allocation8 + $0xe0] sm:$0xff]
    %v1636 = vld [vmem:[#allocation8 + $0xe8] sm:$0xff]
    %v1637 = vld [vmem:[#allocation8 + $0xf0] sm:$0xff]
    %v1638 = vld [vmem:[#allocation8 + $0xf8] sm:$0xff]
    %v1639 = vld [vmem:[#allocation8 + $0x100] sm:$0xff]
    %v1640 = vld [vmem:[#allocation8 + $0x108] sm:$0xff]
    %v1641 = vld [vmem:[#allocation8 + $0x110] sm:$0xff]
    %v1642 = vld [vmem:[#allocation8 + $0x118] sm:$0xff]
    %v1643 = vld [vmem:[#allocation8 + $0x120] sm:$0xff]
    %v1644 = vld [vmem:[#allocation8 + $0x128] sm:$0xff]
    %v1645 = vld [vmem:[#allocation8 + $0x130] sm:$0xff]
    %v1646 = vld [vmem:[#allocation8 + $0x138] sm:$0xff]
    %v1647 = vld [vmem:[#allocation8 + $0x140] sm:$0xff]
    %v1648 = vld [vmem:[#allocation8 + $0x148] sm:$0xff]
    %v1649 = vld [vmem:[#allocation8 + $0x150] sm:$0xff]
    %v1650 = vld [vmem:[#allocation8 + $0x158] sm:$0xff]
    %v1651 = vld [vmem:[#allocation8 + $0x160] sm:$0xff]
    %v1652 = vld [vmem:[#allocation8 + $0x168] sm:$0xff]
    %v1653 = vld [vmem:[#allocation8 + $0x170] sm:$0xff]
    %v1654 = vld [vmem:[#allocation8 + $0x178] sm:$0xff]
    %v1655 = vld [vmem:[#allocation8 + $0x180] sm:$0xff]
    %v1656 = vld [vmem:[#allocation8 + $0x188] sm:$0xff]
    %v1657 = vld [vmem:[#allocation8 + $0x190] sm:$0xff]
    %v1658 = vld [vmem:[#allocation8 + $0x198] sm:$0xff]
    %v1659 = vld [vmem:[#allocation8 + $0x1a0] sm:$0xff]
    %v1660 = vld [vmem:[#allocation8 + $0x1a8] sm:$0xff]
    %v1661 = vld [vmem:[#allocation8 + $0x1b0] sm:$0xff]
    %v1662 = vld [vmem:[#allocation8 + $0x1b8] sm:$0xff]
    %v1663 = vld [vmem:[#allocation8 + $0x1c0] sm:$0xff]
    %v1664 = vld [vmem:[#allocation8 + $0x1c8] sm:$0xff]
    %v1665 = vld [vmem:[#allocation8 + $0x1d0] sm:$0xff]
    %v1666 = vld [vmem:[#allocation8 + $0x1d8] sm:$0xff]
    %v1667 = vld [vmem:[#allocation8 + $0x1e0] sm:$0xff]
    %v1668 = vld [vmem:[#allocation8 + $0x1e8] sm:$0xff]
    %v1669 = vld [vmem:[#allocation8 + $0x1f0] sm:$0xff]
    %v1670 = vld [vmem:[#allocation8 + $0x1f8] sm:$0xff]
    %v1671 = vld [vmem:[%s4] sm:$0x3]
    %v1673 = vperm.slane %v1671, 0
    %v1674 = vperm.slane %v1671, 1
    %v1741 = vunpack.c.l.b16 %v1607
    %v1742 = vunpack.c.h.b16 %v1607
    %v1743 = vunpack.c.l.b16 %v1608
    %v1744 = vunpack.c.h.b16 %v1608
    %v1745 = vunpack.c.l.b16 %v1609
    %v1746 = vunpack.c.h.b16 %v1609
    %v1747 = vunpack.c.l.b16 %v1610
    %v1748 = vunpack.c.h.b16 %v1610
    %v1749 = vunpack.c.l.b16 %v1611
    %v1750 = vunpack.c.h.b16 %v1611
    %v1751 = vunpack.c.l.b16 %v1612
    %v1752 = vunpack.c.h.b16 %v1612
    %v1753 = vunpack.c.l.b16 %v1613
    %v1754 = vunpack.c.h.b16 %v1613
    %v1755 = vunpack.c.l.b16 %v1614
    %v1756 = vunpack.c.h.b16 %v1614
    %v1757 = vunpack.c.l.b16 %v1615
    %v1758 = vunpack.c.h.b16 %v1615
    %v1759 = vunpack.c.l.b16 %v1616
    %v1760 = vunpack.c.h.b16 %v1616
    %v1761 = vunpack.c.l.b16 %v1617
    %v1762 = vunpack.c.h.b16 %v1617
    %v1763 = vunpack.c.l.b16 %v1618
    %v1764 = vunpack.c.h.b16 %v1618
    %v1765 = vunpack.c.l.b16 %v1619
    %v1766 = vunpack.c.h.b16 %v1619
    %v1767 = vunpack.c.l.b16 %v1620
    %v1768 = vunpack.c.h.b16 %v1620
    %v1769 = vunpack.c.l.b16 %v1621
    %v1770 = vunpack.c.h.b16 %v1621
    %v1771 = vunpack.c.l.b16 %v1622
    %v1772 = vunpack.c.h.b16 %v1622
    %v1773 = vunpack.c.l.b16 %v1623
    %v1774 = vunpack.c.h.b16 %v1623
    %v1775 = vunpack.c.l.b16 %v1624
    %v1776 = vunpack.c.h.b16 %v1624
    %v1777 = vunpack.c.l.b16 %v1625
    %v1778 = vunpack.c.h.b16 %v1625
    %v1779 = vunpack.c.l.b16 %v1626
    %v1780 = vunpack.c.h.b16 %v1626
    %v1781 = vunpack.c.l.b16 %v1627
    %v1782 = vunpack.c.h.b16 %v1627
    %v1783 = vunpack.c.l.b16 %v1628
    %v1784 = vunpack.c.h.b16 %v1628
    %v1785 = vunpack.c.l.b16 %v1629
    %v1786 = vunpack.c.h.b16 %v1629
    %v1787 = vunpack.c.l.b16 %v1630
    %v1788 = vunpack.c.h.b16 %v1630
    %v1789 = vunpack.c.l.b16 %v1631
    %v1790 = vunpack.c.h.b16 %v1631
    %v1791 = vunpack.c.l.b16 %v1632
    %v1792 = vunpack.c.h.b16 %v1632
    %v1793 = vunpack.c.l.b16 %v1633
    %v1794 = vunpack.c.h.b16 %v1633
    %v1795 = vunpack.c.l.b16 %v1634
    %v1796 = vunpack.c.h.b16 %v1634
    %v1797 = vunpack.c.l.b16 %v1635
    %v1798 = vunpack.c.h.b16 %v1635
    %v1799 = vunpack.c.l.b16 %v1636
    %v1800 = vunpack.c.h.b16 %v1636
    %v1801 = vunpack.c.l.b16 %v1637
    %v1802 = vunpack.c.h.b16 %v1637
    %v1803 = vunpack.c.l.b16 %v1638
    %v1804 = vunpack.c.h.b16 %v1638
    %v1805 = vunpack.c.l.b16 %v1639
    %v1806 = vunpack.c.h.b16 %v1639
    %v1807 = vunpack.c.l.b16 %v1640
    %v1808 = vunpack.c.h.b16 %v1640
    %v1809 = vunpack.c.l.b16 %v1641
    %v1810 = vunpack.c.h.b16 %v1641
    %v1811 = vunpack.c.l.b16 %v1642
    %v1812 = vunpack.c.h.b16 %v1642
    %v1813 = vunpack.c.l.b16 %v1643
    %v1814 = vunpack.c.h.b16 %v1643
    %v1815 = vunpack.c.l.b16 %v1644
    %v1816 = vunpack.c.h.b16 %v1644
    %v1817 = vunpack.c.l.b16 %v1645
    %v1818 = vunpack.c.h.b16 %v1645
    %v1819 = vunpack.c.l.b16 %v1646
    %v1820 = vunpack.c.h.b16 %v1646
    %v1821 = vunpack.c.l.b16 %v1647
    %v1822 = vunpack.c.h.b16 %v1647
    %v1823 = vunpack.c.l.b16 %v1648
    %v1824 = vunpack.c.h.b16 %v1648
    %v1825 = vunpack.c.l.b16 %v1649
    %v1826 = vunpack.c.h.b16 %v1649
    %v1827 = vunpack.c.l.b16 %v1650
    %v1828 = vunpack.c.h.b16 %v1650
    %v1829 = vunpack.c.l.b16 %v1651
    %v1830 = vunpack.c.h.b16 %v1651
    %v1831 = vunpack.c.l.b16 %v1652
    %v1832 = vunpack.c.h.b16 %v1652
    %v1833 = vunpack.c.l.b16 %v1653
    %v1834 = vunpack.c.h.b16 %v1653
    %v1835 = vunpack.c.l.b16 %v1654
    %v1836 = vunpack.c.h.b16 %v1654
    %v1837 = vunpack.c.l.b16 %v1655
    %v1838 = vunpack.c.h.b16 %v1655
    %v1839 = vunpack.c.l.b16 %v1656
    %v1840 = vunpack.c.h.b16 %v1656
    %v1841 = vunpack.c.l.b16 %v1657
    %v1842 = vunpack.c.h.b16 %v1657
    %v1843 = vunpack.c.l.b16 %v1658
    %v1844 = vunpack.c.h.b16 %v1658
    %v1845 = vunpack.c.l.b16 %v1659
    %v1846 = vunpack.c.h.b16 %v1659
    %v1847 = vunpack.c.l.b16 %v1660
    %v1848 = vunpack.c.h.b16 %v1660
    %v1849 = vunpack.c.l.b16 %v1661
    %v1850 = vunpack.c.h.b16 %v1661
    %v1851 = vunpack.c.l.b16 %v1662
    %v1852 = vunpack.c.h.b16 %v1662
    %v1853 = vunpack.c.l.b16 %v1663
    %v1854 = vunpack.c.h.b16 %v1663
    %v1855 = vunpack.c.l.b16 %v1664
    %v1856 = vunpack.c.h.b16 %v1664
    %v1857 = vunpack.c.l.b16 %v1665
    %v1858 = vunpack.c.h.b16 %v1665
    %v1859 = vunpack.c.l.b16 %v1666
    %v1860 = vunpack.c.h.b16 %v1666
    %v1861 = vunpack.c.l.b16 %v1667
    %v1862 = vunpack.c.h.b16 %v1667
    %v1863 = vunpack.c.l.b16 %v1668
    %v1864 = vunpack.c.h.b16 %v1668
    %v1865 = vunpack.c.l.b16 %v1669
    %v1866 = vunpack.c.h.b16 %v1669
    %v1867 = vunpack.c.l.b16 %v1670
    %v1868 = vunpack.c.h.b16 %v1670
    %v1869 = vpack.c.b16 %v1743, %v1741
    %v1870 = vpack.c.b16 %v1744, %v1742
    %v1871 = vpack.c.b16 %v1747, %v1745
    %v1872 = vpack.c.b16 %v1748, %v1746
    %v1873 = vpack.c.b16 %v1751, %v1749
    %v1874 = vpack.c.b16 %v1752, %v1750
    %v1875 = vpack.c.b16 %v1755, %v1753
    %v1876 = vpack.c.b16 %v1756, %v1754
    %v1877 = vpack.c.b16 %v1759, %v1757
    %v1878 = vpack.c.b16 %v1760, %v1758
    %v1879 = vpack.c.b16 %v1763, %v1761
    %v1880 = vpack.c.b16 %v1764, %v1762
    %v1881 = vpack.c.b16 %v1767, %v1765
    %v1882 = vpack.c.b16 %v1768, %v1766
    %v1883 = vpack.c.b16 %v1771, %v1769
    %v1884 = vpack.c.b16 %v1772, %v1770
    %v1885 = vpack.c.b16 %v1775, %v1773
    %v1886 = vpack.c.b16 %v1776, %v1774
    %v1887 = vpack.c.b16 %v1779, %v1777
    %v1888 = vpack.c.b16 %v1780, %v1778
    %v1889 = vpack.c.b16 %v1783, %v1781
    %v1890 = vpack.c.b16 %v1784, %v1782
    %v1891 = vpack.c.b16 %v1787, %v1785
    %v1892 = vpack.c.b16 %v1788, %v1786
    %v1893 = vpack.c.b16 %v1791, %v1789
    %v1894 = vpack.c.b16 %v1792, %v1790
    %v1895 = vpack.c.b16 %v1795, %v1793
    %v1896 = vpack.c.b16 %v1796, %v1794
    %v1897 = vpack.c.b16 %v1799, %v1797
    %v1898 = vpack.c.b16 %v1800, %v1798
    %v1899 = vpack.c.b16 %v1803, %v1801
    %v1900 = vpack.c.b16 %v1804, %v1802
    %v1901 = vpack.c.b16 %v1807, %v1805
    %v1902 = vpack.c.b16 %v1808, %v1806
    %v1903 = vpack.c.b16 %v1811, %v1809
    %v1904 = vpack.c.b16 %v1812, %v1810
    %v1905 = vpack.c.b16 %v1815, %v1813
    %v1906 = vpack.c.b16 %v1816, %v1814
    %v1907 = vpack.c.b16 %v1819, %v1817
    %v1908 = vpack.c.b16 %v1820, %v1818
    %v1909 = vpack.c.b16 %v1823, %v1821
    %v1910 = vpack.c.b16 %v1824, %v1822
    %v1911 = vpack.c.b16 %v1827, %v1825
    %v1912 = vpack.c.b16 %v1828, %v1826
    %v1913 = vpack.c.b16 %v1831, %v1829
    %v1914 = vpack.c.b16 %v1832, %v1830
    %v1915 = vpack.c.b16 %v1835, %v1833
    %v1916 = vpack.c.b16 %v1836, %v1834
    %v1917 = vpack.c.b16 %v1839, %v1837
    %v1918 = vpack.c.b16 %v1840, %v1838
    %v1919 = vpack.c.b16 %v1843, %v1841
    %v1920 = vpack.c.b16 %v1844, %v1842
    %v1921 = vpack.c.b16 %v1847, %v1845
    %v1922 = vpack.c.b16 %v1848, %v1846
    %v1923 = vpack.c.b16 %v1851, %v1849
    %v1924 = vpack.c.b16 %v1852, %v1850
    %v1925 = vpack.c.b16 %v1855, %v1853
    %v1926 = vpack.c.b16 %v1856, %v1854
    %v1927 = vpack.c.b16 %v1859, %v1857
    %v1928 = vpack.c.b16 %v1860, %v1858
    %v1929 = vpack.c.b16 %v1863, %v1861
    %v1930 = vpack.c.b16 %v1864, %v1862
    %v1931 = vpack.c.b16 %v1867, %v1865
    %v1932 = vpack.c.b16 %v1868, %v1866
    %1997 = vmatpush.bf16.msra.mxu0 %v1883
    %1998 = vmatpush.bf16.msra.mxu0 %v1881
    %1999 = vmatpush.bf16.msra.mxu0 %v1879
    %2000 = vmatpush.bf16.msra.mxu0 %v1877
    %2001 = vmatpush.bf16.msra.mxu0 %v1875
    %2002 = vmatpush.bf16.msra.mxu0 %v1873
    %2003 = vmatpush.bf16.msra.mxu0 %v1871
    %2004 = vmatpush.bf16.msra.mxu0 %v1869
    %2005 = vmatmul.bf16.gmra.mxu0 %v1603
    %v2006 = vpop.f32.mrf.mxu0
    %v2007 = vadd.f32 %v1673, %v2006
    %v2008 = vpop.f32.mrf.mxu0
    %2009 = vdwg.mxu0
    %2010 = vmatpush.bf16.msra.mxu0 %v1899
    %2011 = vmatpush.bf16.msra.mxu0 %v1897
    %2012 = vmatpush.bf16.msra.mxu0 %v1895
    %2013 = vmatpush.bf16.msra.mxu0 %v1893
    %2014 = vmatpush.bf16.msra.mxu0 %v1891
    %2015 = vmatpush.bf16.msra.mxu0 %v1889
    %2016 = vmatpush.bf16.msra.mxu0 %v1887
    %2017 = vmatpush.bf16.msra.mxu0 %v1885
    %2018 = vmatmul.bf16.gmra.mxu0 %v1604
    %v2019 = vpop.f32.mrf.mxu0
    %v2020 = vadd.f32 %v2007, %v2019
    %v2021 = vpop.f32.mrf.mxu0
    %2022 = vdwg.mxu0
    %2023 = vmatpush.bf16.msra.mxu0 %v1915
    %2024 = vmatpush.bf16.msra.mxu0 %v1913
    %2025 = vmatpush.bf16.msra.mxu0 %v1911
    %2026 = vmatpush.bf16.msra.mxu0 %v1909
    %2027 = vmatpush.bf16.msra.mxu0 %v1907
    %2028 = vmatpush.bf16.msra.mxu0 %v1905
    %2029 = vmatpush.bf16.msra.mxu0 %v1903
    %2030 = vmatpush.bf16.msra.mxu0 %v1901
    %2031 = vmatmul.bf16.gmra.mxu0 %v1605
    %v2032 = vpop.f32.mrf.mxu0
    %v2033 = vadd.f32 %v2020, %v2032
    %v2034 = vpop.f32.mrf.mxu0
    %2035 = vdwg.mxu0
    %2036 = vmatpush.bf16.msra.mxu0 %v1931
    %2037 = vmatpush.bf16.msra.mxu0 %v1929
    %2038 = vmatpush.bf16.msra.mxu0 %v1927
    %2039 = vmatpush.bf16.msra.mxu0 %v1925
    %2040 = vmatpush.bf16.msra.mxu0 %v1923
    %2041 = vmatpush.bf16.msra.mxu0 %v1921
    %2042 = vmatpush.bf16.msra.mxu0 %v1919
    %2043 = vmatpush.bf16.msra.mxu0 %v1917
    %2044 = vmatmul.bf16.gmra.mxu0 %v1606
    %v2045 = vpop.f32.mrf.mxu0
    %v2046 = vadd.f32 %v2033, %v2045
    %v2047 = vpop.f32.mrf.mxu0
    %2048 = vdwg.mxu0
    %2049 = vmatpush.bf16.msra.mxu0 %v1884
    %2050 = vmatpush.bf16.msra.mxu0 %v1882
    %2051 = vmatpush.bf16.msra.mxu0 %v1880
    %2052 = vmatpush.bf16.msra.mxu0 %v1878
    %2053 = vmatpush.bf16.msra.mxu0 %v1876
    %2054 = vmatpush.bf16.msra.mxu0 %v1874
    %2055 = vmatpush.bf16.msra.mxu0 %v1872
    %2056 = vmatpush.bf16.msra.mxu0 %v1870
    %2057 = vmatmul.bf16.gmra.mxu0 %v1603
    %v2058 = vpop.f32.mrf.mxu0
    %v2059 = vadd.f32 %v1674, %v2058
    %v2060 = vpop.f32.mrf.mxu0
    %2061 = vdwg.mxu0
    %2062 = vmatpush.bf16.msra.mxu0 %v1900
    %2063 = vmatpush.bf16.msra.mxu0 %v1898
    %2064 = vmatpush.bf16.msra.mxu0 %v1896
    %2065 = vmatpush.bf16.msra.mxu0 %v1894
    %2066 = vmatpush.bf16.msra.mxu0 %v1892
    %2067 = vmatpush.bf16.msra.mxu0 %v1890
    %2068 = vmatpush.bf16.msra.mxu0 %v1888
    %2069 = vmatpush.bf16.msra.mxu0 %v1886
    %2070 = vmatmul.bf16.gmra.mxu0 %v1604
    %v2071 = vpop.f32.mrf.mxu0
    %v2072 = vadd.f32 %v2059, %v2071
    %v2073 = vpop.f32.mrf.mxu0
    %2074 = vdwg.mxu0
    %2075 = vmatpush.bf16.msra.mxu0 %v1916
    %2076 = vmatpush.bf16.msra.mxu0 %v1914
    %2077 = vmatpush.bf16.msra.mxu0 %v1912
    %2078 = vmatpush.bf16.msra.mxu0 %v1910
    %2079 = vmatpush.bf16.msra.mxu0 %v1908
    %2080 = vmatpush.bf16.msra.mxu0 %v1906
    %2081 = vmatpush.bf16.msra.mxu0 %v1904
    %2082 = vmatpush.bf16.msra.mxu0 %v1902
    %2083 = vmatmul.bf16.gmra.mxu0 %v1605
    %v2084 = vpop.f32.mrf.mxu0
    %v2085 = vadd.f32 %v2072, %v2084
    %v2086 = vpop.f32.mrf.mxu0
    %2087 = vdwg.mxu0
    %2088 = vmatpush.bf16.msra.mxu0 %v1932
    %2089 = vmatpush.bf16.msra.mxu0 %v1930
    %2090 = vmatpush.bf16.msra.mxu0 %v1928
    %2091 = vmatpush.bf16.msra.mxu0 %v1926
    %2092 = vmatpush.bf16.msra.mxu0 %v1924
    %2093 = vmatpush.bf16.msra.mxu0 %v1922
    %2094 = vmatpush.bf16.msra.mxu0 %v1920
    %2095 = vmatpush.bf16.msra.mxu0 %v1918
    %2096 = vmatmul.bf16.gmra.mxu0 %v1606
    %v2097 = vpop.f32.mrf.mxu0
    %v2098 = vadd.f32 %v2085, %v2097
    %v2099 = vpop.f32.mrf.mxu0
    %2100 = vdwg.mxu0
    %v2101 = vmax.f32 %v2046, 0.0
    %v2102 = vmax.f32 %v2098, 0.0
    %v2103 = vpack.c.bf16 %v2101, %v2101
    %v2104 = vpack.c.bf16 %v2102, %v2102
    %v2105 = vld [vmem:[#allocation10] sm:$0xf]
    %v2106 = vld [vmem:[#allocation10 + $0x4] sm:$0xf]
    %v2107 = vld [vmem:[#allocation10 + $0x8] sm:$0xf]
    %v2108 = vld [vmem:[#allocation10 + $0xc] sm:$0xf]
    %v2109 = vld [vmem:[#allocation10 + $0x10] sm:$0xf]
    %v2110 = vld [vmem:[#allocation10 + $0x14] sm:$0xf]
    %v2111 = vld [vmem:[#allocation10 + $0x18] sm:$0xf]
    %v2112 = vld [vmem:[#allocation10 + $0x1c] sm:$0xf]
    %v2113 = vld [vmem:[#allocation10 + $0x20] sm:$0xf]
    %v2114 = vld [vmem:[#allocation10 + $0x24] sm:$0xf]
    %v2115 = vld [vmem:[#allocation10 + $0x28] sm:$0xf]
    %v2116 = vld [vmem:[#allocation10 + $0x2c] sm:$0xf]
    %v2117 = vld [vmem:[#allocation10 + $0x30] sm:$0xf]
    %v2118 = vld [vmem:[#allocation10 + $0x34] sm:$0xf]
    %v2119 = vld [vmem:[#allocation10 + $0x38] sm:$0xf]
    %v2120 = vld [vmem:[#allocation10 + $0x3c] sm:$0xf]
    %v2121 = vld [vmem:[#allocation10 + $0x40] sm:$0xf]
    %v2122 = vld [vmem:[#allocation10 + $0x44] sm:$0xf]
    %v2123 = vld [vmem:[#allocation10 + $0x48] sm:$0xf]
    %v2124 = vld [vmem:[#allocation10 + $0x4c] sm:$0xf]
    %v2125 = vld [vmem:[#allocation10 + $0x50] sm:$0xf]
    %v2126 = vld [vmem:[#allocation10 + $0x54] sm:$0xf]
    %v2127 = vld [vmem:[#allocation10 + $0x58] sm:$0xf]
    %v2128 = vld [vmem:[#allocation10 + $0x5c] sm:$0xf]
    %v2129 = vld [vmem:[#allocation10 + $0x60] sm:$0xf]
    %v2130 = vld [vmem:[#allocation10 + $0x64] sm:$0xf]
    %v2131 = vld [vmem:[#allocation10 + $0x68] sm:$0xf]
    %v2132 = vld [vmem:[#allocation10 + $0x6c] sm:$0xf]
    %v2133 = vld [vmem:[#allocation10 + $0x70] sm:$0xf]
    %v2134 = vld [vmem:[#allocation10 + $0x74] sm:$0xf]
    %v2135 = vld [vmem:[#allocation10 + $0x78] sm:$0xf]
    %v2136 = vld [vmem:[#allocation10 + $0x7c] sm:$0xf]
    %v2137 = vld [vmem:[%s6] sm:$0x1]
    %v2139 = vperm.slane %v2137, 0
    %v2173 = vunpack.c.l.b16 %v2105
    %v2174 = vunpack.c.l.b16 %v2106
    %v2175 = vunpack.c.l.b16 %v2107
    %v2176 = vunpack.c.l.b16 %v2108
    %v2177 = vunpack.c.l.b16 %v2109
    %v2178 = vunpack.c.l.b16 %v2110
    %v2179 = vunpack.c.l.b16 %v2111
    %v2180 = vunpack.c.l.b16 %v2112
    %v2181 = vunpack.c.l.b16 %v2113
    %v2182 = vunpack.c.l.b16 %v2114
    %v2183 = vunpack.c.l.b16 %v2115
    %v2184 = vunpack.c.l.b16 %v2116
    %v2185 = vunpack.c.l.b16 %v2117
    %v2186 = vunpack.c.l.b16 %v2118
    %v2187 = vunpack.c.l.b16 %v2119
    %v2188 = vunpack.c.l.b16 %v2120
    %v2189 = vunpack.c.l.b16 %v2121
    %v2190 = vunpack.c.l.b16 %v2122
    %v2191 = vunpack.c.l.b16 %v2123
    %v2192 = vunpack.c.l.b16 %v2124
    %v2193 = vunpack.c.l.b16 %v2125
    %v2194 = vunpack.c.l.b16 %v2126
    %v2195 = vunpack.c.l.b16 %v2127
    %v2196 = vunpack.c.l.b16 %v2128
    %v2197 = vunpack.c.l.b16 %v2129
    %v2198 = vunpack.c.l.b16 %v2130
    %v2199 = vunpack.c.l.b16 %v2131
    %v2200 = vunpack.c.l.b16 %v2132
    %v2201 = vunpack.c.l.b16 %v2133
    %v2202 = vunpack.c.l.b16 %v2134
    %v2203 = vunpack.c.l.b16 %v2135
    %v2204 = vunpack.c.l.b16 %v2136
    %v2205 = vpack.c.b16 %v2174, %v2173
    %v2206 = vpack.c.b16 %v2176, %v2175
    %v2207 = vpack.c.b16 %v2178, %v2177
    %v2208 = vpack.c.b16 %v2180, %v2179
    %v2209 = vpack.c.b16 %v2182, %v2181
    %v2210 = vpack.c.b16 %v2184, %v2183
    %v2211 = vpack.c.b16 %v2186, %v2185
    %v2212 = vpack.c.b16 %v2188, %v2187
    %v2213 = vpack.c.b16 %v2190, %v2189
    %v2214 = vpack.c.b16 %v2192, %v2191
    %v2215 = vpack.c.b16 %v2194, %v2193
    %v2216 = vpack.c.b16 %v2196, %v2195
    %v2217 = vpack.c.b16 %v2198, %v2197
    %v2218 = vpack.c.b16 %v2200, %v2199
    %v2219 = vpack.c.b16 %v2202, %v2201
    %v2220 = vpack.c.b16 %v2204, %v2203
    %2237 = vmatpush.bf16.msra.mxu0 %v2212
    %2238 = vmatpush.bf16.msra.mxu0 %v2211
    %2239 = vmatpush.bf16.msra.mxu0 %v2210
    %2240 = vmatpush.bf16.msra.mxu0 %v2209
    %2241 = vmatpush.bf16.msra.mxu0 %v2208
    %2242 = vmatpush.bf16.msra.mxu0 %v2207
    %2243 = vmatpush.bf16.msra.mxu0 %v2206
    %2244 = vmatpush.bf16.msra.mxu0 %v2205
    %2245 = vmatmul.bf16.gmra.mxu0 %v2103
    %v2246 = vpop.f32.mrf.mxu0
    %v2247 = vadd.f32 %v2139, %v2246
    %v2248 = vpop.f32.mrf.mxu0
    %2249 = vdwg.mxu0
    %2250 = vmatpush.bf16.msra.mxu0 %v2220
    %2251 = vmatpush.bf16.msra.mxu0 %v2219
    %2252 = vmatpush.bf16.msra.mxu0 %v2218
    %2253 = vmatpush.bf16.msra.mxu0 %v2217
    %2254 = vmatpush.bf16.msra.mxu0 %v2216
    %2255 = vmatpush.bf16.msra.mxu0 %v2215
    %2256 = vmatpush.bf16.msra.mxu0 %v2214
    %2257 = vmatpush.bf16.msra.mxu0 %v2213
    %2258 = vmatmul.bf16.gmra.mxu0 %v2104
    %v2259 = vpop.f32.mrf.mxu0
    %v2260 = vadd.f32 %v2247, %v2259
    %v2261 = vpop.f32.mrf.mxu0
    %2262 = vdwg.mxu0
    %2263 = vmax.xlane.f32.xlu0 %v2260
    %v2264 = vpop.xlane.xlu0 %2263
    %v2265 = vsub.f32 %v2260, %v2264
    %v2266 = vmul.f32 %v2265, 1.442695
    %v2267 = vpow.pop %v2266
    %2268 = vadd.xlane.f32.xlu0 %v2267
    %v2269 = vpop.xlane.xlu0 %2268
    %v2270 = vlog2.pop %v2269
    %v2271 = vmul.f32 %v2270, 0.6931472
    %v2272 = vsub.f32 %v2265, %v2271
    %2273 = vst [vmem:[#allocation11] sm:$0xff] %v2272
    // Predicated region
    $region50: #{tpu_custom_call.1} parent=1 // pred_check
      _
    $region51: #{tpu_custom_call.1} parent=1 // pred_check_branch
      %2275 = sbr.rel (0) target = $region53
    $region52: #{tpu_custom_call.1} parent=1 // pred_region
      %2277 = vsyncadd [#allocation4], 0
      %s2279 = sshll.u32 [#allocation11], 4
      %s2280 = int_to_ptr.vmem [resolvable:$true] %s2279
      %s2281 = sshll.u32 %s7, 4
      %s2282 = int_to_ptr.hbm [resolvable:$true] %s2281
      %2284 = dma.vmem_to_hbm [thread:$0]  %s2280, 128, %s2282, [#allocation4]
    $region53: #{tpu_custom_call.1} parent=1 // pred_fallthru
      _
    // Predicated region
    $region54: #{tpu_custom_call.1} parent=1 // pred_check
      _
    $region55: #{tpu_custom_call.1} parent=1 // pred_check_branch
      %2286 = sbr.rel (0) target = $region57
    $region56: #{tpu_custom_call.1} parent=1 // pred_region
      %2288 = dma.done [#allocation4], 128
    $region57: #{tpu_custom_call.1} parent=1 // pred_fallthru
      _
    %2289 = vsyncpa [#allocation3], 1
    %2290 = vsyncpa [#allocation6], 1
    %2291 = vsyncpa [#allocation9], 1
    %2292 = vsyncpa [#allocation4], 1

</llo_original>
